<compile_context>
chip_gen: v7x
topology: tpu7x:2x2x1
jax: 0.10.0
libtpu: 0.0.40
codegen_flags: <defaults>
</compile_context>

<pallas_src>
import functools

import numpy as np

import jax
import jax.numpy as jnp
from jax.experimental import pallas as pl
from jax.experimental.pallas import tpu as pltpu


# ----------------------------- Pallas kernel -------------------------------

def _conv_bn_act_kernel(w_ref, b_ref, mask_ref, x_ref, out_ref, pad_ref, *,
                        C_in, K, W, pad, apply_relu, use_mxu, mask_taps):
    """Conv(KxK, stride 1) + folded-BN affine + optional ReLU for one image.

    w_ref   : VMEM (K*K, C_out_t, C_in) f32  BN-folded weights, tap-major.
    b_ref   : VMEM (C_out_t, 1)         f32  BN-folded bias.
    mask_ref: VMEM (K*K, HW)            f32  per-tap column-validity masks.
    x_ref   : VMEM (1, C_in, HW)             one image, flat spatial (lanes).
    out_ref : VMEM (1, C_out_t, HW)
    pad_ref : VMEM (C_in, HW + (K-1)*(W+1)) f32 scratch with zero row margins.
    """
    C_out_t, HW = out_ref.shape[1], out_ref.shape[2]
    padL = pad * (W + 1)

    # In-kernel zero padding (flat, stride-W layout).  Out-of-range rows land
    # in the explicit zero margins; column wrap-around of the flat shifts is
    # zeroed by the per-tap column masks below.
    pad_ref[...] = jnp.zeros_like(pad_ref)
    pad_ref[:, padL:padL + HW] = x_ref[0].astype(jnp.float32)

    acc = jnp.zeros((C_out_t, HW), jnp.float32)
    for dy in range(K):
        for dx in range(K):
            t = dy * K + dx
            # Tap (dy, dx) for output flat index i reads padded flat index
            # (dy*W + dx) + i  -> a lane-dense (C_in, HW) window.
            win = pad_ref[:, dy * W + dx: dy * W + dx + HW]       # (C_in, HW)
            if mask_taps[t]:
                win = win * mask_ref[t:t + 1, :]                  # zero wrapped cols
            w_t = w_ref[t]                                        # (C_out_t, C_in)
            if use_mxu:
                # Per-tap contraction over C_in on the MXU, f32 accumulate.
                acc = acc + jnp.dot(w_t, win,
                                    preferred_element_type=jnp.float32)
            else:
                # Toy channel counts: lane-dense broadcast FMAs on the VPU.
                for ci in range(C_in):
                    acc = acc + w_t[:, ci:ci + 1] * win[ci:ci + 1, :]

    acc = acc + b_ref[...]                                        # folded BN bias
    if apply_relu:
        acc = jnp.maximum(acc, 0.0)
    out_ref[0] = acc.astype(out_ref.dtype)


def conv_bn_act_pallas(x_flat, w_taps, b_col, masks, *, K, W, pad, apply_relu,
                       use_mxu, mask_taps):
    """x_flat: (N, C_in, H*W) -> (N, C_out, H*W)  (stride-W flat output)."""
    N, C_in, HW = x_flat.shape
    KK, C_out, _ = w_taps.shape
    L = HW + (K - 1) * (W + 1)                 # flat length incl. row margins

    c_out_t = C_out if C_out <= 128 else 128   # C_out tile (full at small sizes)
    assert C_out % c_out_t == 0

    kernel = functools.partial(
        _conv_bn_act_kernel, C_in=C_in, K=K, W=W, pad=pad,
        apply_relu=apply_relu, use_mxu=use_mxu, mask_taps=mask_taps)

    # Explicit VMEM budget with headroom (double-buffered blocks + scratch).
    block_bytes = 4 * (KK * c_out_t * C_in + c_out_t + KK * HW
                       + C_in * HW + c_out_t * HW + C_in * L)
    vmem_limit = int(min(64 * 2 ** 20, max(32 * 2 ** 20, 4 * block_bytes)))

    return pl.pallas_call(
        kernel,
        out_shape=jax.ShapeDtypeStruct((N, C_out, HW), x_flat.dtype),
        grid_spec=pltpu.PrefetchScalarGridSpec(
            num_scalar_prefetch=0,
            grid=(N, C_out // c_out_t),
            in_specs=[
                pl.BlockSpec((KK, c_out_t, C_in), lambda n, co: (0, co, 0)),
                pl.BlockSpec((c_out_t, 1), lambda n, co: (co, 0)),
                pl.BlockSpec((KK, HW), lambda n, co: (0, 0)),
                pl.BlockSpec((1, C_in, HW), lambda n, co: (n, 0, 0)),
            ],
            out_specs=pl.BlockSpec((1, c_out_t, HW), lambda n, co: (n, co, 0)),
            scratch_shapes=[pltpu.VMEM((C_in, L), jnp.float32)],
        ),
        compiler_params=pltpu.CompilerParams(
            dimension_semantics=("parallel", "parallel"),
            vmem_limit_bytes=vmem_limit),
    )(w_taps, b_col, masks, x_flat)


# --------------------------- parameter handling -----------------------------

def _fold_bn(conv_w, conv_b, gamma, beta, mean, var, eps=1e-5):
    """Fold eval-mode BatchNorm into the preceding conv (f32)."""
    scale = gamma / jnp.sqrt(var + eps)                          # (C_out,)
    w_eff = (conv_w * scale[:, None, None, None]).astype(jnp.float32)
    b0 = conv_b if conv_b is not None else jnp.zeros_like(beta)
    b_eff = (scale * (b0 - mean) + beta).astype(jnp.float32)
    return w_eff, b_eff


def _column_masks(K, pad, H, W):
    """Per-tap column validity masks for the flat (stride-W) shift scheme."""
    x = np.arange(H * W) % W
    masks = np.zeros((K * K, H * W), np.float32)
    needed = []
    for dy in range(K):
        for dx in range(K):
            valid = (x + dx - pad >= 0) & (x + dx - pad <= W - 1)
            masks[dy * K + dx] = valid.astype(np.float32)
            needed.append(bool(not valid.all()))
    return jnp.asarray(masks), tuple(needed)


def init_conv2d_block_params(key, in_ch, out_ch, kernel_size, activation=True):
    """Synthetic params matching conv2d_block.__init__ (kaiming conv,
    BN weight ~ N(1, 0.02), BN bias = 0, eval-mode running stats)."""
    kw, kb, kg, km, kv = jax.random.split(key, 5)
    fan_in = in_ch * kernel_size * kernel_size
    conv_w = jax.random.normal(
        kw, (out_ch, in_ch, kernel_size, kernel_size), jnp.float32
    ) * jnp.sqrt(2.0 / fan_in)
    conv_b = (None if activation
              else 0.1 * jax.random.normal(kb, (out_ch,), jnp.float32))
    gamma = 1.0 + 0.02 * jax.random.normal(kg, (out_ch,), jnp.float32)
    beta = jnp.zeros((out_ch,), jnp.float32)
    mean = 0.1 * jax.random.normal(km, (out_ch,), jnp.float32)
    var = jnp.abs(1.0 + 0.1 * jax.random.normal(kv, (out_ch,), jnp.float32))
    return dict(conv_w=conv_w, conv_b=conv_b, bn_gamma=gamma, bn_beta=beta,
                bn_mean=mean, bn_var=var)


# ------------------------------- wrapper ------------------------------------

def conv2d_block_forward(x_nchw, params, *, activation=True):
    """Forward of conv2d_block. NCHW in/out (no layout transposes)."""
    conv_w = params["conv_w"]
    C_out, C_in, K, _ = conv_w.shape
    N, _, H, W = x_nchw.shape
    pad = 1 if activation else 0          # matches the two PyTorch branches

    w_eff, b_eff = _fold_bn(conv_w, params.get("conv_b"), params["bn_gamma"],
                            params["bn_beta"], params["bn_mean"],
                            params["bn_var"])
    # Tap-major weight layout (K*K, C_out, C_in) for the per-tap contraction.
    w_taps = jnp.transpose(w_eff, (2, 3, 0, 1)).reshape(K * K, C_out, C_in)
    b_col = b_eff[:, None]                                       # (C_out, 1)
    masks, mask_taps = _column_masks(K, pad, H, W)

    x_flat = x_nchw.reshape(N, C_in, H * W)      # free metadata reshape (NCHW)
    use_mxu = (C_in * C_out) >= 256              # VPU FMAs only for toy channels

    y_flat = conv_bn_act_pallas(x_flat, w_taps, b_col, masks,
                                K=K, W=W, pad=pad, apply_relu=activation,
                                use_mxu=use_mxu, mask_taps=mask_taps)
    y = y_flat.reshape(N, C_out, H, W)
    H_out = H + 2 * pad - K + 1
    W_out = W + 2 * pad - K + 1
    if (H_out, W_out) != (H, W):
        y = y[:, :, :H_out, :W_out]              # crop stride-W junk (pad=0 branch)
    return y


def conv2d_block_reference(x_nchw, params, *, activation=True, eps=1e-5):
    """Pure-JAX reference (XLA conv, HIGHEST precision)."""
    conv_w = params["conv_w"]
    pad = 1 if activation else 0
    y = jax.lax.conv_general_dilated(
        x_nchw, conv_w, window_strides=(1, 1),
        padding=[(pad, pad), (pad, pad)],
        dimension_numbers=("NCHW", "OIHW", "NCHW"),
        precision=jax.lax.Precision.HIGHEST)
    if params.get("conv_b") is not None:
        y = y + params["conv_b"][None, :, None, None]
    scale = params["bn_gamma"] / jnp.sqrt(params["bn_var"] + eps)
    y = (y - params["bn_mean"][None, :, None, None]) \
        * scale[None, :, None, None] + params["bn_beta"][None, :, None, None]
    if activation:
        y = jnp.maximum(y, 0.0)
    return y


# --------------------------------- main --------------------------------------

if __name__ == "__main__":
    key = jax.random.PRNGKey(0)
    k1, k2, k3, k4 = jax.random.split(key, 4)

    # Test 1: module defaults (activation=True), toy shapes -> VPU tap-FMA path.
    in_ch, out_ch, ks = 4, 4, 3
    N, H, W = 2, 16, 16
    x = jax.random.normal(k1, (N, in_ch, H, W), jnp.float32)
    params = init_conv2d_block_params(k2, in_ch, out_ch, ks, activation=True)
    out = jax.block_until_ready(conv2d_block_forward(x, params, activation=True))
    ref = conv2d_block_reference(x, params, activation=True)
    assert out.shape == ref.shape == (N, out_ch, H, W)
    assert float(jnp.max(jnp.abs(out - ref))) < 1e-4

    # Test 2: activation=False branch (padding=0, conv bias, BN, no ReLU).
    params_na = init_conv2d_block_params(k3, in_ch, out_ch, ks, activation=False)
    out_na = jax.block_until_ready(
        conv2d_block_forward(x, params_na, activation=False))
    ref_na = conv2d_block_reference(x, params_na, activation=False)
    assert out_na.shape == ref_na.shape == (N, out_ch, H - 2, W - 2)
    assert float(jnp.max(jnp.abs(out_na - ref_na))) < 1e-4

    # Test 3: larger channel count -> MXU per-tap matmul path.
    in_ch2, out_ch2 = 32, 32
    x2 = jax.random.normal(k4, (N, in_ch2, H, W), jnp.float32)
    params2 = init_conv2d_block_params(k2, in_ch2, out_ch2, ks, activation=True)
    out2 = jax.block_until_ready(
        conv2d_block_forward(x2, params2, activation=True))
    ref2 = conv2d_block_reference(x2, params2, activation=True)
    assert out2.shape == ref2.shape == (N, out_ch2, H, W)
    # Looser tolerance: MXU f32 matmul may truncate operand mantissas.
    assert float(jnp.max(jnp.abs(out2 - ref2))) < 5e-2

    print("KERNEL_OK")
</pallas_src>

<mosaic_0001>
module attributes {stable_mosaic.version = 11 : i64} {
  func.func @_conv_bn_act_kernel(%arg0: i32, %arg1: i32, %arg2: memref<9x4x4xf32, #tpu.memory_space<vmem>>, %arg3: memref<4x1xf32, #tpu.memory_space<vmem>>, %arg4: memref<9x256xf32, #tpu.memory_space<vmem>>, %arg5: memref<1x4x256xf32, #tpu.memory_space<vmem>>, %arg6: memref<1x4x256xf32, #tpu.memory_space<vmem>>, %arg7: memref<4x290xf32, #tpu.memory_space<vmem>>) attributes {dimension_semantics = [#tpu.dimension_semantics<parallel>, #tpu.dimension_semantics<parallel>], iteration_bounds = array<i64: 2, 1>, scalar_prefetch = 0 : i64, scratch_operands = 1 : i64, tpu.core_type = #tpu.core_type<tc>, window_params = [{transform_indices = @transform_0, window_bounds = array<i64: 9, 4, 4>}, {transform_indices = @transform_1, window_bounds = array<i64: 4, 1>}, {pipeline_mode = #tpu.pipeline_mode<synchronous>, transform_indices = @transform_2, window_bounds = array<i64: 9, 256>}, {transform_indices = @transform_3, window_bounds = array<i64: 1, 4, 256>}, {transform_indices = @transform_4, window_bounds = array<i64: 1, 4, 256>}]} {
    %cst = arith.constant 0.000000e+00 : f32
    %0 = vector.broadcast %cst : f32 to vector<4x290xf32>
    %c0 = arith.constant 0 : index
    %c0_0 = arith.constant 0 : index
    %1 = vector.load %arg7[%c0, %c0_0] : memref<4x290xf32, #tpu.memory_space<vmem>>, vector<4x290xf32>
    tpu.vector_store %arg7[%c0, %c0_0], %0 {strides = array<i32>} : memref<4x290xf32, #tpu.memory_space<vmem>>, vector<4x290xf32>,
    %c0_1 = arith.constant 0 : index
    %c0_2 = arith.constant 0 : index
    %c0_3 = arith.constant 0 : index
    %2 = vector.load %arg5[%c0_1, %c0_2, %c0_3] : memref<1x4x256xf32, #tpu.memory_space<vmem>>, vector<1x4x256xf32>
    %3 = vector.shape_cast %2 : vector<1x4x256xf32> to vector<4x256xf32>
    %c0_4 = arith.constant 0 : index
    %c17 = arith.constant 17 : index
    %4 = vector.load %arg7[%c0_4, %c17] : memref<4x290xf32, #tpu.memory_space<vmem>>, vector<4x256xf32>
    tpu.vector_store %arg7[%c0_4, %c17], %3 {strides = array<i32>} : memref<4x290xf32, #tpu.memory_space<vmem>>, vector<4x256xf32>,
    %cst_5 = arith.constant 0.000000e+00 : f32
    %5 = vector.broadcast %cst_5 : f32 to vector<4x256xf32>
    %c0_6 = arith.constant 0 : index
    %c0_7 = arith.constant 0 : index
    %6 = vector.load %arg7[%c0_6, %c0_7] : memref<4x290xf32, #tpu.memory_space<vmem>>, vector<4x256xf32>
    %c0_8 = arith.constant 0 : index
    %c0_9 = arith.constant 0 : index
    %7 = vector.load %arg4[%c0_8, %c0_9] : memref<9x256xf32, #tpu.memory_space<vmem>>, vector<1x256xf32>
    %8 = vector.broadcast %7 : vector<1x256xf32> to vector<4x256xf32>
    %9 = arith.mulf %6, %8 : vector<4x256xf32>
    %c0_10 = arith.constant 0 : index
    %c0_11 = arith.constant 0 : index
    %c0_12 = arith.constant 0 : index
    %10 = vector.load %arg2[%c0_10, %c0_11, %c0_12] : memref<9x4x4xf32, #tpu.memory_space<vmem>>, vector<1x4x4xf32>
    %11 = vector.shape_cast %10 : vector<1x4x4xf32> to vector<4x4xf32>
    %12 = vector.extract_strided_slice %11 {offsets = [0, 0], sizes = [4, 1], strides = [1, 1]} : vector<4x4xf32> to vector<4x1xf32>
    %13 = vector.extract_strided_slice %9 {offsets = [0, 0], sizes = [1, 256], strides = [1, 1]} : vector<4x256xf32> to vector<1x256xf32>
    %14 = vector.broadcast %12 : vector<4x1xf32> to vector<4x256xf32>
    %15 = vector.broadcast %13 : vector<1x256xf32> to vector<4x256xf32>
    %16 = arith.mulf %14, %15 : vector<4x256xf32>
    %17 = arith.addf %5, %16 : vector<4x256xf32>
    %18 = vector.extract_strided_slice %11 {offsets = [0, 1], sizes = [4, 1], strides = [1, 1]} : vector<4x4xf32> to vector<4x1xf32>
    %19 = vector.extract_strided_slice %9 {offsets = [1, 0], sizes = [1, 256], strides = [1, 1]} : vector<4x256xf32> to vector<1x256xf32>
    %20 = vector.broadcast %18 : vector<4x1xf32> to vector<4x256xf32>
    %21 = vector.broadcast %19 : vector<1x256xf32> to vector<4x256xf32>
    %22 = arith.mulf %20, %21 : vector<4x256xf32>
    %23 = arith.addf %17, %22 : vector<4x256xf32>
    %24 = vector.extract_strided_slice %11 {offsets = [0, 2], sizes = [4, 1], strides = [1, 1]} : vector<4x4xf32> to vector<4x1xf32>
    %25 = vector.extract_strided_slice %9 {offsets = [2, 0], sizes = [1, 256], strides = [1, 1]} : vector<4x256xf32> to vector<1x256xf32>
    %26 = vector.broadcast %24 : vector<4x1xf32> to vector<4x256xf32>
    %27 = vector.broadcast %25 : vector<1x256xf32> to vector<4x256xf32>
    %28 = arith.mulf %26, %27 : vector<4x256xf32>
    %29 = arith.addf %23, %28 : vector<4x256xf32>
    %30 = vector.extract_strided_slice %11 {offsets = [0, 3], sizes = [4, 1], strides = [1, 1]} : vector<4x4xf32> to vector<4x1xf32>
    %31 = vector.extract_strided_slice %9 {offsets = [3, 0], sizes = [1, 256], strides = [1, 1]} : vector<4x256xf32> to vector<1x256xf32>
    %32 = vector.broadcast %30 : vector<4x1xf32> to vector<4x256xf32>
    %33 = vector.broadcast %31 : vector<1x256xf32> to vector<4x256xf32>
    %34 = arith.mulf %32, %33 : vector<4x256xf32>
    %35 = arith.addf %29, %34 : vector<4x256xf32>
    %c0_13 = arith.constant 0 : index
    %c1 = arith.constant 1 : index
    %36 = vector.load %arg7[%c0_13, %c1] : memref<4x290xf32, #tpu.memory_space<vmem>>, vector<4x256xf32>
    %c1_14 = arith.constant 1 : index
    %c0_15 = arith.constant 0 : index
    %c0_16 = arith.constant 0 : index
    %37 = vector.load %arg2[%c1_14, %c0_15, %c0_16] : memref<9x4x4xf32, #tpu.memory_space<vmem>>, vector<1x4x4xf32>
    %38 = vector.shape_cast %37 : vector<1x4x4xf32> to vector<4x4xf32>
    %39 = vector.extract_strided_slice %38 {offsets = [0, 0], sizes = [4, 1], strides = [1, 1]} : vector<4x4xf32> to vector<4x1xf32>
    %40 = vector.extract_strided_slice %36 {offsets = [0, 0], sizes = [1, 256], strides = [1, 1]} : vector<4x256xf32> to vector<1x256xf32>
    %41 = vector.broadcast %39 : vector<4x1xf32> to vector<4x256xf32>
    %42 = vector.broadcast %40 : vector<1x256xf32> to vector<4x256xf32>
    %43 = arith.mulf %41, %42 : vector<4x256xf32>
    %44 = arith.addf %35, %43 : vector<4x256xf32>
    %45 = vector.extract_strided_slice %38 {offsets = [0, 1], sizes = [4, 1], strides = [1, 1]} : vector<4x4xf32> to vector<4x1xf32>
    %46 = vector.extract_strided_slice %36 {offsets = [1, 0], sizes = [1, 256], strides = [1, 1]} : vector<4x256xf32> to vector<1x256xf32>
    %47 = vector.broadcast %45 : vector<4x1xf32> to vector<4x256xf32>
    %48 = vector.broadcast %46 : vector<1x256xf32> to vector<4x256xf32>
    %49 = arith.mulf %47, %48 : vector<4x256xf32>
    %50 = arith.addf %44, %49 : vector<4x256xf32>
    %51 = vector.extract_strided_slice %38 {offsets = [0, 2], sizes = [4, 1], strides = [1, 1]} : vector<4x4xf32> to vector<4x1xf32>
    %52 = vector.extract_strided_slice %36 {offsets = [2, 0], sizes = [1, 256], strides = [1, 1]} : vector<4x256xf32> to vector<1x256xf32>
    %53 = vector.broadcast %51 : vector<4x1xf32> to vector<4x256xf32>
    %54 = vector.broadcast %52 : vector<1x256xf32> to vector<4x256xf32>
    %55 = arith.mulf %53, %54 : vector<4x256xf32>
    %56 = arith.addf %50, %55 : vector<4x256xf32>
    %57 = vector.extract_strided_slice %38 {offsets = [0, 3], sizes = [4, 1], strides = [1, 1]} : vector<4x4xf32> to vector<4x1xf32>
    %58 = vector.extract_strided_slice %36 {offsets = [3, 0], sizes = [1, 256], strides = [1, 1]} : vector<4x256xf32> to vector<1x256xf32>
    %59 = vector.broadcast %57 : vector<4x1xf32> to vector<4x256xf32>
    %60 = vector.broadcast %58 : vector<1x256xf32> to vector<4x256xf32>
    %61 = arith.mulf %59, %60 : vector<4x256xf32>
    %62 = arith.addf %56, %61 : vector<4x256xf32>
    %c0_17 = arith.constant 0 : index
    %c2 = arith.constant 2 : index
    %63 = vector.load %arg7[%c0_17, %c2] : memref<4x290xf32, #tpu.memory_space<vmem>>, vector<4x256xf32>
    %c2_18 = arith.constant 2 : index
    %c0_19 = arith.constant 0 : index
    %64 = vector.load %arg4[%c2_18, %c0_19] : memref<9x256xf32, #tpu.memory_space<vmem>>, vector<1x256xf32>
    %65 = vector.broadcast %64 : vector<1x256xf32> to vector<4x256xf32>
    %66 = arith.mulf %63, %65 : vector<4x256xf32>
    %c2_20 = arith.constant 2 : index
    %c0_21 = arith.constant 0 : index
    %c0_22 = arith.constant 0 : index
    %67 = vector.load %arg2[%c2_20, %c0_21, %c0_22] : memref<9x4x4xf32, #tpu.memory_space<vmem>>, vector<1x4x4xf32>
    %68 = vector.shape_cast %67 : vector<1x4x4xf32> to vector<4x4xf32>
    %69 = vector.extract_strided_slice %68 {offsets = [0, 0], sizes = [4, 1], strides = [1, 1]} : vector<4x4xf32> to vector<4x1xf32>
    %70 = vector.extract_strided_slice %66 {offsets = [0, 0], sizes = [1, 256], strides = [1, 1]} : vector<4x256xf32> to vector<1x256xf32>
    %71 = vector.broadcast %69 : vector<4x1xf32> to vector<4x256xf32>
    %72 = vector.broadcast %70 : vector<1x256xf32> to vector<4x256xf32>
    %73 = arith.mulf %71, %72 : vector<4x256xf32>
    %74 = arith.addf %62, %73 : vector<4x256xf32>
    %75 = vector.extract_strided_slice %68 {offsets = [0, 1], sizes = [4, 1], strides = [1, 1]} : vector<4x4xf32> to vector<4x1xf32>
    %76 = vector.extract_strided_slice %66 {offsets = [1, 0], sizes = [1, 256], strides = [1, 1]} : vector<4x256xf32> to vector<1x256xf32>
    %77 = vector.broadcast %75 : vector<4x1xf32> to vector<4x256xf32>
    %78 = vector.broadcast %76 : vector<1x256xf32> to vector<4x256xf32>
    %79 = arith.mulf %77, %78 : vector<4x256xf32>
    %80 = arith.addf %74, %79 : vector<4x256xf32>
    %81 = vector.extract_strided_slice %68 {offsets = [0, 2], sizes = [4, 1], strides = [1, 1]} : vector<4x4xf32> to vector<4x1xf32>
    %82 = vector.extract_strided_slice %66 {offsets = [2, 0], sizes = [1, 256], strides = [1, 1]} : vector<4x256xf32> to vector<1x256xf32>
    %83 = vector.broadcast %81 : vector<4x1xf32> to vector<4x256xf32>
    %84 = vector.broadcast %82 : vector<1x256xf32> to vector<4x256xf32>
    %85 = arith.mulf %83, %84 : vector<4x256xf32>
    %86 = arith.addf %80, %85 : vector<4x256xf32>
    %87 = vector.extract_strided_slice %68 {offsets = [0, 3], sizes = [4, 1], strides = [1, 1]} : vector<4x4xf32> to vector<4x1xf32>
    %88 = vector.extract_strided_slice %66 {offsets = [3, 0], sizes = [1, 256], strides = [1, 1]} : vector<4x256xf32> to vector<1x256xf32>
    %89 = vector.broadcast %87 : vector<4x1xf32> to vector<4x256xf32>
    %90 = vector.broadcast %88 : vector<1x256xf32> to vector<4x256xf32>
    %91 = arith.mulf %89, %90 : vector<4x256xf32>
    %92 = arith.addf %86, %91 : vector<4x256xf32>
    %c0_23 = arith.constant 0 : index
    %c16 = arith.constant 16 : index
    %93 = vector.load %arg7[%c0_23, %c16] : memref<4x290xf32, #tpu.memory_space<vmem>>, vector<4x256xf32>
    %c3 = arith.constant 3 : index
    %c0_24 = arith.constant 0 : index
    %94 = vector.load %arg4[%c3, %c0_24] : memref<9x256xf32, #tpu.memory_space<vmem>>, vector<1x256xf32>
    %95 = vector.broadcast %94 : vector<1x256xf32> to vector<4x256xf32>
    %96 = arith.mulf %93, %95 : vector<4x256xf32>
    %c3_25 = arith.constant 3 : index
    %c0_26 = arith.constant 0 : index
    %c0_27 = arith.constant 0 : index
    %97 = vector.load %arg2[%c3_25, %c0_26, %c0_27] : memref<9x4x4xf32, #tpu.memory_space<vmem>>, vector<1x4x4xf32>
    %98 = vector.shape_cast %97 : vector<1x4x4xf32> to vector<4x4xf32>
    %99 = vector.extract_strided_slice %98 {offsets = [0, 0], sizes = [4, 1], strides = [1, 1]} : vector<4x4xf32> to vector<4x1xf32>
    %100 = vector.extract_strided_slice %96 {offsets = [0, 0], sizes = [1, 256], strides = [1, 1]} : vector<4x256xf32> to vector<1x256xf32>
    %101 = vector.broadcast %99 : vector<4x1xf32> to vector<4x256xf32>
    %102 = vector.broadcast %100 : vector<1x256xf32> to vector<4x256xf32>
    %103 = arith.mulf %101, %102 : vector<4x256xf32>
    %104 = arith.addf %92, %103 : vector<4x256xf32>
    %105 = vector.extract_strided_slice %98 {offsets = [0, 1], sizes = [4, 1], strides = [1, 1]} : vector<4x4xf32> to vector<4x1xf32>
    %106 = vector.extract_strided_slice %96 {offsets = [1, 0], sizes = [1, 256], strides = [1, 1]} : vector<4x256xf32> to vector<1x256xf32>
    %107 = vector.broadcast %105 : vector<4x1xf32> to vector<4x256xf32>
    %108 = vector.broadcast %106 : vector<1x256xf32> to vector<4x256xf32>
    %109 = arith.mulf %107, %108 : vector<4x256xf32>
    %110 = arith.addf %104, %109 : vector<4x256xf32>
    %111 = vector.extract_strided_slice %98 {offsets = [0, 2], sizes = [4, 1], strides = [1, 1]} : vector<4x4xf32> to vector<4x1xf32>
    %112 = vector.extract_strided_slice %96 {offsets = [2, 0], sizes = [1, 256], strides = [1, 1]} : vector<4x256xf32> to vector<1x256xf32>
    %113 = vector.broadcast %111 : vector<4x1xf32> to vector<4x256xf32>
    %114 = vector.broadcast %112 : vector<1x256xf32> to vector<4x256xf32>
    %115 = arith.mulf %113, %114 : vector<4x256xf32>
    %116 = arith.addf %110, %115 : vector<4x256xf32>
    %117 = vector.extract_strided_slice %98 {offsets = [0, 3], sizes = [4, 1], strides = [1, 1]} : vector<4x4xf32> to vector<4x1xf32>
    %118 = vector.extract_strided_slice %96 {offsets = [3, 0], sizes = [1, 256], strides = [1, 1]} : vector<4x256xf32> to vector<1x256xf32>
    %119 = vector.broadcast %117 : vector<4x1xf32> to vector<4x256xf32>
    %120 = vector.broadcast %118 : vector<1x256xf32> to vector<4x256xf32>
    %121 = arith.mulf %119, %120 : vector<4x256xf32>
    %122 = arith.addf %116, %121 : vector<4x256xf32>
    %c0_28 = arith.constant 0 : index
    %c17_29 = arith.constant 17 : index
    %123 = vector.load %arg7[%c0_28, %c17_29] : memref<4x290xf32, #tpu.memory_space<vmem>>, vector<4x256xf32>
    %c4 = arith.constant 4 : index
    %c0_30 = arith.constant 0 : index
    %c0_31 = arith.constant 0 : index
    %124 = vector.load %arg2[%c4, %c0_30, %c0_31] : memref<9x4x4xf32, #tpu.memory_space<vmem>>, vector<1x4x4xf32>
    %125 = vector.shape_cast %124 : vector<1x4x4xf32> to vector<4x4xf32>
    %126 = vector.extract_strided_slice %125 {offsets = [0, 0], sizes = [4, 1], strides = [1, 1]} : vector<4x4xf32> to vector<4x1xf32>
    %127 = vector.extract_strided_slice %123 {offsets = [0, 0], sizes = [1, 256], strides = [1, 1]} : vector<4x256xf32> to vector<1x256xf32>
    %128 = vector.broadcast %126 : vector<4x1xf32> to vector<4x256xf32>
    %129 = vector.broadcast %127 : vector<1x256xf32> to vector<4x256xf32>
    %130 = arith.mulf %128, %129 : vector<4x256xf32>
    %131 = arith.addf %122, %130 : vector<4x256xf32>
    %132 = vector.extract_strided_slice %125 {offsets = [0, 1], sizes = [4, 1], strides = [1, 1]} : vector<4x4xf32> to vector<4x1xf32>
    %133 = vector.extract_strided_slice %123 {offsets = [1, 0], sizes = [1, 256], strides = [1, 1]} : vector<4x256xf32> to vector<1x256xf32>
    %134 = vector.broadcast %132 : vector<4x1xf32> to vector<4x256xf32>
    %135 = vector.broadcast %133 : vector<1x256xf32> to vector<4x256xf32>
    %136 = arith.mulf %134, %135 : vector<4x256xf32>
    %137 = arith.addf %131, %136 : vector<4x256xf32>
    %138 = vector.extract_strided_slice %125 {offsets = [0, 2], sizes = [4, 1], strides = [1, 1]} : vector<4x4xf32> to vector<4x1xf32>
    %139 = vector.extract_strided_slice %123 {offsets = [2, 0], sizes = [1, 256], strides = [1, 1]} : vector<4x256xf32> to vector<1x256xf32>
    %140 = vector.broadcast %138 : vector<4x1xf32> to vector<4x256xf32>
    %141 = vector.broadcast %139 : vector<1x256xf32> to vector<4x256xf32>
    %142 = arith.mulf %140, %141 : vector<4x256xf32>
    %143 = arith.addf %137, %142 : vector<4x256xf32>
    %144 = vector.extract_strided_slice %125 {offsets = [0, 3], sizes = [4, 1], strides = [1, 1]} : vector<4x4xf32> to vector<4x1xf32>
    %145 = vector.extract_strided_slice %123 {offsets = [3, 0], sizes = [1, 256], strides = [1, 1]} : vector<4x256xf32> to vector<1x256xf32>
    %146 = vector.broadcast %144 : vector<4x1xf32> to vector<4x256xf32>
    %147 = vector.broadcast %145 : vector<1x256xf32> to vector<4x256xf32>
    %148 = arith.mulf %146, %147 : vector<4x256xf32>
    %149 = arith.addf %143, %148 : vector<4x256xf32>
    %c0_32 = arith.constant 0 : index
    %c18 = arith.constant 18 : index
    %150 = vector.load %arg7[%c0_32, %c18] : memref<4x290xf32, #tpu.memory_space<vmem>>, vector<4x256xf32>
    %c5 = arith.constant 5 : index
    %c0_33 = arith.constant 0 : index
    %151 = vector.load %arg4[%c5, %c0_33] : memref<9x256xf32, #tpu.memory_space<vmem>>, vector<1x256xf32>
    %152 = vector.broadcast %151 : vector<1x256xf32> to vector<4x256xf32>
    %153 = arith.mulf %150, %152 : vector<4x256xf32>
    %c5_34 = arith.constant 5 : index
    %c0_35 = arith.constant 0 : index
    %c0_36 = arith.constant 0 : index
    %154 = vector.load %arg2[%c5_34, %c0_35, %c0_36] : memref<9x4x4xf32, #tpu.memory_space<vmem>>, vector<1x4x4xf32>
    %155 = vector.shape_cast %154 : vector<1x4x4xf32> to vector<4x4xf32>
    %156 = vector.extract_strided_slice %155 {offsets = [0, 0], sizes = [4, 1], strides = [1, 1]} : vector<4x4xf32> to vector<4x1xf32>
    %157 = vector.extract_strided_slice %153 {offsets = [0, 0], sizes = [1, 256], strides = [1, 1]} : vector<4x256xf32> to vector<1x256xf32>
    %158 = vector.broadcast %156 : vector<4x1xf32> to vector<4x256xf32>
    %159 = vector.broadcast %157 : vector<1x256xf32> to vector<4x256xf32>
    %160 = arith.mulf %158, %159 : vector<4x256xf32>
    %161 = arith.addf %149, %160 : vector<4x256xf32>
    %162 = vector.extract_strided_slice %155 {offsets = [0, 1], sizes = [4, 1], strides = [1, 1]} : vector<4x4xf32> to vector<4x1xf32>
    %163 = vector.extract_strided_slice %153 {offsets = [1, 0], sizes = [1, 256], strides = [1, 1]} : vector<4x256xf32> to vector<1x256xf32>
    %164 = vector.broadcast %162 : vector<4x1xf32> to vector<4x256xf32>
    %165 = vector.broadcast %163 : vector<1x256xf32> to vector<4x256xf32>
    %166 = arith.mulf %164, %165 : vector<4x256xf32>
    %167 = arith.addf %161, %166 : vector<4x256xf32>
    %168 = vector.extract_strided_slice %155 {offsets = [0, 2], sizes = [4, 1], strides = [1, 1]} : vector<4x4xf32> to vector<4x1xf32>
    %169 = vector.extract_strided_slice %153 {offsets = [2, 0], sizes = [1, 256], strides = [1, 1]} : vector<4x256xf32> to vector<1x256xf32>
    %170 = vector.broadcast %168 : vector<4x1xf32> to vector<4x256xf32>
    %171 = vector.broadcast %169 : vector<1x256xf32> to vector<4x256xf32>
    %172 = arith.mulf %170, %171 : vector<4x256xf32>
    %173 = arith.addf %167, %172 : vector<4x256xf32>
    %174 = vector.extract_strided_slice %155 {offsets = [0, 3], sizes = [4, 1], strides = [1, 1]} : vector<4x4xf32> to vector<4x1xf32>
    %175 = vector.extract_strided_slice %153 {offsets = [3, 0], sizes = [1, 256], strides = [1, 1]} : vector<4x256xf32> to vector<1x256xf32>
    %176 = vector.broadcast %174 : vector<4x1xf32> to vector<4x256xf32>
    %177 = vector.broadcast %175 : vector<1x256xf32> to vector<4x256xf32>
    %178 = arith.mulf %176, %177 : vector<4x256xf32>
    %179 = arith.addf %173, %178 : vector<4x256xf32>
    %c0_37 = arith.constant 0 : index
    %c32 = arith.constant 32 : index
    %180 = vector.load %arg7[%c0_37, %c32] : memref<4x290xf32, #tpu.memory_space<vmem>>, vector<4x256xf32>
    %c6 = arith.constant 6 : index
    %c0_38 = arith.constant 0 : index
    %181 = vector.load %arg4[%c6, %c0_38] : memref<9x256xf32, #tpu.memory_space<vmem>>, vector<1x256xf32>
    %182 = vector.broadcast %181 : vector<1x256xf32> to vector<4x256xf32>
    %183 = arith.mulf %180, %182 : vector<4x256xf32>
    %c6_39 = arith.constant 6 : index
    %c0_40 = arith.constant 0 : index
    %c0_41 = arith.constant 0 : index
    %184 = vector.load %arg2[%c6_39, %c0_40, %c0_41] : memref<9x4x4xf32, #tpu.memory_space<vmem>>, vector<1x4x4xf32>
    %185 = vector.shape_cast %184 : vector<1x4x4xf32> to vector<4x4xf32>
    %186 = vector.extract_strided_slice %185 {offsets = [0, 0], sizes = [4, 1], strides = [1, 1]} : vector<4x4xf32> to vector<4x1xf32>
    %187 = vector.extract_strided_slice %183 {offsets = [0, 0], sizes = [1, 256], strides = [1, 1]} : vector<4x256xf32> to vector<1x256xf32>
    %188 = vector.broadcast %186 : vector<4x1xf32> to vector<4x256xf32>
    %189 = vector.broadcast %187 : vector<1x256xf32> to vector<4x256xf32>
    %190 = arith.mulf %188, %189 : vector<4x256xf32>
    %191 = arith.addf %179, %190 : vector<4x256xf32>
    %192 = vector.extract_strided_slice %185 {offsets = [0, 1], sizes = [4, 1], strides = [1, 1]} : vector<4x4xf32> to vector<4x1xf32>
    %193 = vector.extract_strided_slice %183 {offsets = [1, 0], sizes = [1, 256], strides = [1, 1]} : vector<4x256xf32> to vector<1x256xf32>
    %194 = vector.broadcast %192 : vector<4x1xf32> to vector<4x256xf32>
    %195 = vector.broadcast %193 : vector<1x256xf32> to vector<4x256xf32>
    %196 = arith.mulf %194, %195 : vector<4x256xf32>
    %197 = arith.addf %191, %196 : vector<4x256xf32>
    %198 = vector.extract_strided_slice %185 {offsets = [0, 2], sizes = [4, 1], strides = [1, 1]} : vector<4x4xf32> to vector<4x1xf32>
    %199 = vector.extract_strided_slice %183 {offsets = [2, 0], sizes = [1, 256], strides = [1, 1]} : vector<4x256xf32> to vector<1x256xf32>
    %200 = vector.broadcast %198 : vector<4x1xf32> to vector<4x256xf32>
    %201 = vector.broadcast %199 : vector<1x256xf32> to vector<4x256xf32>
    %202 = arith.mulf %200, %201 : vector<4x256xf32>
    %203 = arith.addf %197, %202 : vector<4x256xf32>
    %204 = vector.extract_strided_slice %185 {offsets = [0, 3], sizes = [4, 1], strides = [1, 1]} : vector<4x4xf32> to vector<4x1xf32>
    %205 = vector.extract_strided_slice %183 {offsets = [3, 0], sizes = [1, 256], strides = [1, 1]} : vector<4x256xf32> to vector<1x256xf32>
    %206 = vector.broadcast %204 : vector<4x1xf32> to vector<4x256xf32>
    %207 = vector.broadcast %205 : vector<1x256xf32> to vector<4x256xf32>
    %208 = arith.mulf %206, %207 : vector<4x256xf32>
    %209 = arith.addf %203, %208 : vector<4x256xf32>
    %c0_42 = arith.constant 0 : index
    %c33 = arith.constant 33 : index
    %210 = vector.load %arg7[%c0_42, %c33] : memref<4x290xf32, #tpu.memory_space<vmem>>, vector<4x256xf32>
    %c7 = arith.constant 7 : index
    %c0_43 = arith.constant 0 : index
    %c0_44 = arith.constant 0 : index
    %211 = vector.load %arg2[%c7, %c0_43, %c0_44] : memref<9x4x4xf32, #tpu.memory_space<vmem>>, vector<1x4x4xf32>
    %212 = vector.shape_cast %211 : vector<1x4x4xf32> to vector<4x4xf32>
    %213 = vector.extract_strided_slice %212 {offsets = [0, 0], sizes = [4, 1], strides = [1, 1]} : vector<4x4xf32> to vector<4x1xf32>
    %214 = vector.extract_strided_slice %210 {offsets = [0, 0], sizes = [1, 256], strides = [1, 1]} : vector<4x256xf32> to vector<1x256xf32>
    %215 = vector.broadcast %213 : vector<4x1xf32> to vector<4x256xf32>
    %216 = vector.broadcast %214 : vector<1x256xf32> to vector<4x256xf32>
    %217 = arith.mulf %215, %216 : vector<4x256xf32>
    %218 = arith.addf %209, %217 : vector<4x256xf32>
    %219 = vector.extract_strided_slice %212 {offsets = [0, 1], sizes = [4, 1], strides = [1, 1]} : vector<4x4xf32> to vector<4x1xf32>
    %220 = vector.extract_strided_slice %210 {offsets = [1, 0], sizes = [1, 256], strides = [1, 1]} : vector<4x256xf32> to vector<1x256xf32>
    %221 = vector.broadcast %219 : vector<4x1xf32> to vector<4x256xf32>
    %222 = vector.broadcast %220 : vector<1x256xf32> to vector<4x256xf32>
    %223 = arith.mulf %221, %222 : vector<4x256xf32>
    %224 = arith.addf %218, %223 : vector<4x256xf32>
    %225 = vector.extract_strided_slice %212 {offsets = [0, 2], sizes = [4, 1], strides = [1, 1]} : vector<4x4xf32> to vector<4x1xf32>
    %226 = vector.extract_strided_slice %210 {offsets = [2, 0], sizes = [1, 256], strides = [1, 1]} : vector<4x256xf32> to vector<1x256xf32>
    %227 = vector.broadcast %225 : vector<4x1xf32> to vector<4x256xf32>
    %228 = vector.broadcast %226 : vector<1x256xf32> to vector<4x256xf32>
    %229 = arith.mulf %227, %228 : vector<4x256xf32>
    %230 = arith.addf %224, %229 : vector<4x256xf32>
    %231 = vector.extract_strided_slice %212 {offsets = [0, 3], sizes = [4, 1], strides = [1, 1]} : vector<4x4xf32> to vector<4x1xf32>
    %232 = vector.extract_strided_slice %210 {offsets = [3, 0], sizes = [1, 256], strides = [1, 1]} : vector<4x256xf32> to vector<1x256xf32>
    %233 = vector.broadcast %231 : vector<4x1xf32> to vector<4x256xf32>
    %234 = vector.broadcast %232 : vector<1x256xf32> to vector<4x256xf32>
    %235 = arith.mulf %233, %234 : vector<4x256xf32>
    %236 = arith.addf %230, %235 : vector<4x256xf32>
    %c0_45 = arith.constant 0 : index
    %c34 = arith.constant 34 : index
    %237 = vector.load %arg7[%c0_45, %c34] : memref<4x290xf32, #tpu.memory_space<vmem>>, vector<4x256xf32>
    %c8 = arith.constant 8 : index
    %c0_46 = arith.constant 0 : index
    %238 = vector.load %arg4[%c8, %c0_46] : memref<9x256xf32, #tpu.memory_space<vmem>>, vector<1x256xf32>
    %239 = vector.broadcast %238 : vector<1x256xf32> to vector<4x256xf32>
    %240 = arith.mulf %237, %239 : vector<4x256xf32>
    %c8_47 = arith.constant 8 : index
    %c0_48 = arith.constant 0 : index
    %c0_49 = arith.constant 0 : index
    %241 = vector.load %arg2[%c8_47, %c0_48, %c0_49] : memref<9x4x4xf32, #tpu.memory_space<vmem>>, vector<1x4x4xf32>
    %242 = vector.shape_cast %241 : vector<1x4x4xf32> to vector<4x4xf32>
    %243 = vector.extract_strided_slice %242 {offsets = [0, 0], sizes = [4, 1], strides = [1, 1]} : vector<4x4xf32> to vector<4x1xf32>
    %244 = vector.extract_strided_slice %240 {offsets = [0, 0], sizes = [1, 256], strides = [1, 1]} : vector<4x256xf32> to vector<1x256xf32>
    %245 = vector.broadcast %243 : vector<4x1xf32> to vector<4x256xf32>
    %246 = vector.broadcast %244 : vector<1x256xf32> to vector<4x256xf32>
    %247 = arith.mulf %245, %246 : vector<4x256xf32>
    %248 = arith.addf %236, %247 : vector<4x256xf32>
    %249 = vector.extract_strided_slice %242 {offsets = [0, 1], sizes = [4, 1], strides = [1, 1]} : vector<4x4xf32> to vector<4x1xf32>
    %250 = vector.extract_strided_slice %240 {offsets = [1, 0], sizes = [1, 256], strides = [1, 1]} : vector<4x256xf32> to vector<1x256xf32>
    %251 = vector.broadcast %249 : vector<4x1xf32> to vector<4x256xf32>
    %252 = vector.broadcast %250 : vector<1x256xf32> to vector<4x256xf32>
    %253 = arith.mulf %251, %252 : vector<4x256xf32>
    %254 = arith.addf %248, %253 : vector<4x256xf32>
    %255 = vector.extract_strided_slice %242 {offsets = [0, 2], sizes = [4, 1], strides = [1, 1]} : vector<4x4xf32> to vector<4x1xf32>
    %256 = vector.extract_strided_slice %240 {offsets = [2, 0], sizes = [1, 256], strides = [1, 1]} : vector<4x256xf32> to vector<1x256xf32>
    %257 = vector.broadcast %255 : vector<4x1xf32> to vector<4x256xf32>
    %258 = vector.broadcast %256 : vector<1x256xf32> to vector<4x256xf32>
    %259 = arith.mulf %257, %258 : vector<4x256xf32>
    %260 = arith.addf %254, %259 : vector<4x256xf32>
    %261 = vector.extract_strided_slice %242 {offsets = [0, 3], sizes = [4, 1], strides = [1, 1]} : vector<4x4xf32> to vector<4x1xf32>
    %262 = vector.extract_strided_slice %240 {offsets = [3, 0], sizes = [1, 256], strides = [1, 1]} : vector<4x256xf32> to vector<1x256xf32>
    %263 = vector.broadcast %261 : vector<4x1xf32> to vector<4x256xf32>
    %264 = vector.broadcast %262 : vector<1x256xf32> to vector<4x256xf32>
    %265 = arith.mulf %263, %264 : vector<4x256xf32>
    %266 = arith.addf %260, %265 : vector<4x256xf32>
    %c0_50 = arith.constant 0 : index
    %c0_51 = arith.constant 0 : index
    %267 = vector.load %arg3[%c0_50, %c0_51] : memref<4x1xf32, #tpu.memory_space<vmem>>, vector<4x1xf32>
    %268 = vector.broadcast %267 : vector<4x1xf32> to vector<4x256xf32>
    %269 = arith.addf %266, %268 : vector<4x256xf32>
    %cst_52 = arith.constant 0.000000e+00 : f32
    %270 = vector.broadcast %cst_52 : f32 to vector<4x256xf32>
    %271 = arith.maximumf %269, %270 : vector<4x256xf32>
    %c0_53 = arith.constant 0 : index
    %c0_54 = arith.constant 0 : index
    %c0_55 = arith.constant 0 : index
    %272 = vector.load %arg6[%c0_53, %c0_54, %c0_55] : memref<1x4x256xf32, #tpu.memory_space<vmem>>, vector<1x4x256xf32>
    %273 = vector.shape_cast %272 : vector<1x4x256xf32> to vector<4x256xf32>
    %274 = vector.shape_cast %271 : vector<4x256xf32> to vector<1x4x256xf32>
    tpu.vector_store %arg6[%c0_53, %c0_54, %c0_55], %274 {strides = array<i32>} : memref<1x4x256xf32, #tpu.memory_space<vmem>>, vector<1x4x256xf32>,
    return
  }
  func.func @transform_0(%arg0: i32, %arg1: i32) -> (i32, i32, i32) {
    %c0_i32 = arith.constant 0 : i32
    %c0_i32_0 = arith.constant 0 : i32
    %c0_i32_1 = arith.constant 0 : i32
    return %c0_i32, %arg1, %c0_i32_0 : i32, i32, i32
  }
  func.func @transform_1(%arg0: i32, %arg1: i32) -> (i32, i32) {
    %c0_i32 = arith.constant 0 : i32
    %c0_i32_0 = arith.constant 0 : i32
    return %arg1, %c0_i32 : i32, i32
  }
  func.func @transform_2(%arg0: i32, %arg1: i32) -> (i32, i32) {
    %c0_i32 = arith.constant 0 : i32
    %c0_i32_0 = arith.constant 0 : i32
    %c0_i32_1 = arith.constant 0 : i32
    return %c0_i32, %c0_i32_0 : i32, i32
  }
  func.func @transform_3(%arg0: i32, %arg1: i32) -> (i32, i32, i32) {
    %c0_i32 = arith.constant 0 : i32
    %c0_i32_0 = arith.constant 0 : i32
    %c0_i32_1 = arith.constant 0 : i32
    return %arg0, %c0_i32, %c0_i32_0 : i32, i32, i32
  }
  func.func @transform_4(%arg0: i32, %arg1: i32) -> (i32, i32, i32) {
    %c0_i32 = arith.constant 0 : i32
    %c0_i32_0 = arith.constant 0 : i32
    return %arg0, %arg1, %c0_i32 : i32, i32, i32
  }
}

</mosaic_0001>

<llo_original>
// kernel: tpu_custom_call.1
$region0: #{tpu_custom_call.1}
  #allocation0 [shape = 'u32[]', space=smem, size = 0x4, offset = 0x4, fixed_abs, tag = 'smem constant byte address 0x4 - core index']
  #allocation1 [shape = 'u32[144,128]{1,0:T(1,128)}', space=vmem, size = 0x12000, scoped, tag = 'internal scratch']
  #allocation2 [shape = 'f32[4,290]{1,0:T(4,128)}', space=vmem, size = 0x1800, scoped, tag = 'scratch operand']
  %s0 = inlined_call_operand.vmem [shape: f32[9,4,4], index: 0, kind: input, shape index: {}]
  %s1 = inlined_call_operand.vmem [shape: f32[4,1], index: 1, kind: input, shape index: {}]
  %s2 = inlined_call_operand.vmem [shape: f32[9,256], index: 2, kind: input, shape index: {}]
  %s3 = inlined_call_operand.vmem [shape: f32[2,4,256], index: 3, kind: input, shape index: {}]
  %s4 = inlined_call_operand.hbm [shape: f32[2,4,256], index: 4, kind: output, shape index: {}]
  %s5 = sld [smem:[#allocation0]]
  $region49: #{tpu_custom_call.1} parent=0
    _
  %s7 = ssub.s32 1, %s5
  %s8 = scalar_select 0, %s7, %s5
  $region1: #{tpu_custom_call.1} parent=0
    #allocation3 [shape = 'u8[8192]{0}', space=vmem, size = 0x2000, scoped, tag = 'output window, operand 0']
    #allocation4 [shape = 's32[2]{0}', space=sflag, size = 0x8, scoped, tag = 'scoped memory for tpu_custom_call.1']
    %9 = vsyncpa [#allocation4], 0
    %s10 = scalar_lea.sflag [#allocation4], 1
    %11 = vsyncpa %s10, 0
    loop: start=0, step=1, limit=4
    $region2: #{tpu_custom_call.1} parent=1 // loop_pre_header
      _
    $region3: #{tpu_custom_call.1} parent=1 // loop_header
      %s13 = sphi 0, %s17
      %p14 = scmp.ge.s32.totalorder %s13, 4
      %s20 = sphi 0, %s32
      %s21 = sphi 0, %s28
      %s22 = sphi 0, %s20
      %s23 = sphi 0, %s21
      %s24 = sphi 0, %s22
      %s25 = sphi 0, %s23
      %s35 = sphi 0, %s37
      %s38 = sphi 0, %s35
      %s39 = sphi 0, %s38
      %s55 = sphi 0, %s39
      %s61 = sphi 0, %s63
      %s64 = sphi 0, %s61
      %s65 = sphi 0, %s64
      %s81 = sphi 0, %s65
      %s85 = sphi 0, %s85
      %s87 = sphi 0, %s85
      %s88 = sphi 0, %s87
      %s102 = sphi 0, %s88
      %s108 = sphi 0, %s110
      %s111 = sphi 0, %s108
      %s112 = sphi 0, %s111
      %s128 = sphi 0, %s112
      %s136 = sphi 0, %s138
      %s139 = sphi 0, %s136
      %s140 = sphi 0, %s139
      %s156 = sphi 0, %s140
    $region4: #{tpu_custom_call.1} parent=1 // loop_header_branch
      %16 = sbr.rel (%p14) target = $region8
    $region5: #{tpu_custom_call.1} parent=1 // loop_body
      %s18 = ssub.s32 %s13, 1
      %s19 = ssub.s32 %s13, 2
      %s26 = sadd.s32 1, %s21
      %p27 = scmp.ge.s32.totalorder %s26, 1
      %s28 = scalar_select %p27, 0, %s26
      %s29 = sadd.s32 1, %s20
      %s30 = scalar_select %p27, %s29, %s20
      %p31 = scmp.ge.s32.totalorder %s30, 2
      %s32 = scalar_select %p31, 0, %s30
      %s33 = ssub.s32 %s21, %s28
      %p34 = scmp.eq.s32.totalorder %s33, 0
      %s36 = sadd.s32 %s35, 1
      %s37 = scalar_select %p34, %s35, %s36
      %p40 = pneg %p34
      %p41 = scmp.eq.s32.totalorder %s13, 1
      %p42 = por %p40, %p41
      %p43 = scmp.ne.s32.totalorder %s35, %s38
      %p44 = scmp.eq.s32.totalorder %s13, 0
      %p45 = por %p43, %p44
      %p46 = scmp.ne.s32.totalorder %s35, %s38
      %p47 = scmp.eq.s32.totalorder %s18, 1
      %p48 = por %p46, %p47
      %p49 = scmp.ne.s32.totalorder %s38, %s39
      %p50 = scmp.eq.s32.totalorder %s18, 0
      %p51 = por %p49, %p50
      %p52 = scmp.ne.s32.totalorder %s38, %s39
      %p53 = scmp.eq.s32.totalorder %s19, 1
      %p54 = por %p52, %p53
      %p56 = scmp.ne.s32.totalorder %s39, %s55
      %p57 = scmp.eq.s32.totalorder %s19, 0
      %p58 = por %p56, %p57
      %s59 = ssub.s32 %s21, %s28
      %p60 = scmp.eq.s32.totalorder %s59, 0
      %s62 = sadd.s32 %s61, 1
      %s63 = scalar_select %p60, %s61, %s62
      %p66 = pneg %p60
      %p67 = scmp.eq.s32.totalorder %s13, 1
      %p68 = por %p66, %p67
      %p69 = scmp.ne.s32.totalorder %s61, %s64
      %p70 = scmp.eq.s32.totalorder %s13, 0
      %p71 = por %p69, %p70
      %p72 = scmp.ne.s32.totalorder %s61, %s64
      %p73 = scmp.eq.s32.totalorder %s18, 1
      %p74 = por %p72, %p73
      %p75 = scmp.ne.s32.totalorder %s64, %s65
      %p76 = scmp.eq.s32.totalorder %s18, 0
      %p77 = por %p75, %p76
      %p78 = scmp.ne.s32.totalorder %s64, %s65
      %p79 = scmp.eq.s32.totalorder %s19, 1
      %p80 = por %p78, %p79
      %p82 = scmp.ne.s32.totalorder %s65, %s81
      %p83 = scmp.eq.s32.totalorder %s19, 0
      %p84 = por %p82, %p83
      %s86 = sadd.s32 %s85, 1
      %p89 = scmp.eq.s32.totalorder %s13, 1
      %p90 = scmp.ne.s32.totalorder %s85, %s87
      %p91 = scmp.eq.s32.totalorder %s13, 0
      %p92 = por %p90, %p91
      %p93 = scmp.ne.s32.totalorder %s85, %s87
      %p94 = scmp.eq.s32.totalorder %s18, 1
      %p95 = por %p93, %p94
      %p96 = scmp.ne.s32.totalorder %s87, %s88
      %p97 = scmp.eq.s32.totalorder %s18, 0
      %p98 = por %p96, %p97
      %p99 = scmp.ne.s32.totalorder %s87, %s88
      %p100 = scmp.eq.s32.totalorder %s19, 1
      %p101 = por %p99, %p100
      %p103 = scmp.ne.s32.totalorder %s88, %s102
      %p104 = scmp.eq.s32.totalorder %s19, 0
      %p105 = por %p103, %p104
      %s106 = ssub.s32 %s20, %s32
      %p107 = scmp.eq.s32.totalorder %s106, 0
      %s109 = sadd.s32 %s108, 1
      %s110 = scalar_select %p107, %s108, %s109
      %p113 = pneg %p107
      %p114 = scmp.eq.s32.totalorder %s13, 1
      %p115 = por %p113, %p114
      %p116 = scmp.ne.s32.totalorder %s108, %s111
      %p117 = scmp.eq.s32.totalorder %s13, 0
      %p118 = por %p116, %p117
      %p119 = scmp.ne.s32.totalorder %s108, %s111
      %p120 = scmp.eq.s32.totalorder %s18, 1
      %p121 = por %p119, %p120
      %p122 = scmp.ne.s32.totalorder %s111, %s112
      %p123 = scmp.eq.s32.totalorder %s18, 0
      %p124 = por %p122, %p123
      %p125 = scmp.ne.s32.totalorder %s111, %s112
      %p126 = scmp.eq.s32.totalorder %s19, 1
      %p127 = por %p125, %p126
      %p129 = scmp.ne.s32.totalorder %s112, %s128
      %p130 = scmp.eq.s32.totalorder %s19, 0
      %p131 = por %p129, %p130
      %s132 = ssub.s32 %s20, %s32
      %s133 = ssub.s32 %s21, %s28
      %s134 = sor.u32 %s132, %s133
      %p135 = scmp.eq.s32.totalorder %s134, 0
      %s137 = sadd.s32 %s136, 1
      %s138 = scalar_select %p135, %s136, %s137
      %p141 = pneg %p135
      %p142 = scmp.eq.s32.totalorder %s13, 1
      %p143 = por %p141, %p142
      %p144 = scmp.ne.s32.totalorder %s136, %s139
      %p145 = scmp.eq.s32.totalorder %s13, 0
      %p146 = por %p144, %p145
      %p147 = scmp.ne.s32.totalorder %s136, %s139
      %p148 = scmp.eq.s32.totalorder %s18, 1
      %p149 = por %p147, %p148
      %p150 = scmp.ne.s32.totalorder %s139, %s140
      %p151 = scmp.eq.s32.totalorder %s18, 0
      %p152 = por %p150, %p151
      %p153 = scmp.ne.s32.totalorder %s139, %s140
      %p154 = scmp.eq.s32.totalorder %s19, 1
      %p155 = por %p153, %p154
      %p157 = scmp.ne.s32.totalorder %s140, %s156
      %p158 = scmp.eq.s32.totalorder %s19, 0
      %p159 = por %p157, %p158
      %p160 = scmp.le.s32.totalorder 1, %s13
      %p161 = scmp.lt.s32.totalorder %s13, 3
      %p162 = pnand %p160, %p161
      %p163 = pneg %p162
      // Predicated region
      $region9: #{tpu_custom_call.1} parent=5 // pred_check
        _
      $region10: #{tpu_custom_call.1} parent=5 // pred_check_branch
        %165 = sbr.rel (%p162) target = $region12
      $region11: #{tpu_custom_call.1} parent=5 // pred_region
        %s166 = ssub.s32 %s13, 1
        // Predicated region
        $region13: #{tpu_custom_call.1} parent=11 // pred_check
          %p167 = pneg %p51
        $region14: #{tpu_custom_call.1} parent=11 // pred_check_branch
          %169 = sbr.rel (%p167) target = $region16
        $region15: #{tpu_custom_call.1} parent=11 // pred_region
          %p170 = scmp.lt.s32.totalorder %s23, 0
          %s171 = scalar_select %p170, %s23, 0
          %s172 = smul.addr %s171, 4
          %s173 = scalar_lea.vmem %s0, %s172
        $region16: #{tpu_custom_call.1} parent=11 // pred_fallthru
          _
        // Predicated region
        $region17: #{tpu_custom_call.1} parent=11 // pred_check
          %p174 = pneg %p77
        $region18: #{tpu_custom_call.1} parent=11 // pred_check_branch
          %176 = sbr.rel (%p174) target = $region20
        $region19: #{tpu_custom_call.1} parent=11 // pred_region
          %p177 = scmp.lt.s32.totalorder %s23, 0
          %s178 = scalar_select %p177, %s23, 0
          %s179 = smul.addr %s178, 4
          %s180 = scalar_lea.vmem %s1, %s179
        $region20: #{tpu_custom_call.1} parent=11 // pred_fallthru
          _
        // Predicated region
        $region21: #{tpu_custom_call.1} parent=11 // pred_check
          %p181 = pneg %p98
        $region22: #{tpu_custom_call.1} parent=11 // pred_check_branch
          %183 = sbr.rel (%p181) target = $region24
        $region23: #{tpu_custom_call.1} parent=11 // pred_region
          _
        $region24: #{tpu_custom_call.1} parent=11 // pred_fallthru
          _
      $region12: #{tpu_custom_call.1} parent=5 // pred_fallthru
        _
      %p184 = scmp.lt.s32.totalorder %s13, 2
      // Predicated region
      $region25: #{tpu_custom_call.1} parent=5 // pred_check
        %p185 = pneg %p184
      $region26: #{tpu_custom_call.1} parent=5 // pred_check_branch
        %187 = sbr.rel (%p185) target = $region28
      $region27: #{tpu_custom_call.1} parent=5 // pred_region
        // Predicated region
        $region29: #{tpu_custom_call.1} parent=27 // pred_check
          %p188 = pneg %p118
        $region30: #{tpu_custom_call.1} parent=27 // pred_check_branch
          %190 = sbr.rel (%p188) target = $region32
        $region31: #{tpu_custom_call.1} parent=27 // pred_region
          %p191 = scmp.lt.s32.totalorder %s20, 1
          %s192 = scalar_select %p191, %s20, 1
          %s193 = smul.addr %s192, 2
          %s194 = smul.addr %s193, 4
          %s195 = scalar_lea.vmem %s3, %s194
        $region32: #{tpu_custom_call.1} parent=27 // pred_fallthru
          _
      $region28: #{tpu_custom_call.1} parent=5 // pred_fallthru
        _
      %p196 = scmp.le.s32.totalorder 1, %s13
      %p197 = scmp.lt.s32.totalorder %s13, 3
      %p198 = pnand %p196, %p197
      %p199 = pneg %p198
      // Predicated region
      $region33: #{tpu_custom_call.1} parent=5 // pred_check
        _
      $region34: #{tpu_custom_call.1} parent=5 // pred_check_branch
        %201 = sbr.rel (%p198) target = $region36
      $region35: #{tpu_custom_call.1} parent=5 // pred_region
        %s202 = ssub.s32 %s13, 1
        %p203 = scmp.lt.s32.totalorder %s23, 0
        %s204 = scalar_select %p203, %s23, 0
        %s205 = smul.addr %s204, 4
        %s206 = scalar_lea.vmem %s0, %s205
        %p207 = pneg %p51
        %p208 = pneg %p48
        %p209 = scmp.lt.s32.totalorder %s23, 0
        %s210 = scalar_select %p209, %s23, 0
        %s211 = smul.addr %s210, 4
        %s212 = scalar_lea.vmem %s1, %s211
        %p213 = pneg %p77
        %p214 = pneg %p74
        %p215 = pneg %p98
        %p216 = pneg %p95
        %p217 = scmp.lt.s32.totalorder %s22, 1
        %s218 = scalar_select %p217, %s22, 1
        %s219 = smul.addr %s218, 2
        %s220 = smul.addr %s219, 4
        %s221 = scalar_lea.vmem %s3, %s220
        %p222 = pneg %p124
        %p223 = pneg %p121
        %p224 = pneg %p152
        %p225 = pneg %p149
        %s226 = sand.u32 %s139, 1
        %s227 = scalar_lea.sflag [#allocation4], %s226
        %s228 = sand.u32 %s139, 1
        %s229 = smul.addr %s228, 8
        %s230 = scalar_lea.vmem [#allocation3], %s229
        %p231 = scmp.lt.s32.totalorder %s23, 0
        %s232 = scalar_select %p231, %s23, 0
        %s233 = smul.addr %s232, 4
        %s234 = scalar_lea.vmem %s0, %s233
        %p235 = scmp.lt.s32.totalorder %s23, 0
        %s236 = scalar_select %p235, %s23, 0
        %s237 = smul.addr %s236, 4
        %s238 = scalar_lea.vmem %s1, %s237
        %p239 = scmp.lt.s32.totalorder %s22, 1
        %s240 = scalar_select %p239, %s22, 1
        %s241 = smul.addr %s240, 2
        %s242 = smul.addr %s241, 4
        %s243 = scalar_lea.vmem %s3, %s242
        %244 = vst [vmem:[#allocation2] sm:$0xff] 0.0
        %vm245 = vcmask 273408
        %246 = vst.msk [vmem:[#allocation2 + $0x8] sm:$0xf] %vm245, 0.0
        %v247 = vld [vmem:[%s243] sm:$0xff]
        %249 = vrot.lane.b32.xlu0 %v247, 17
        %v250 = vpop.permute.xlu0 %249
        %v251 = vrot.slane %v250, 4
        %vm252 = vcmask 138240
        %v253 = vsel %vm252, %v251, %v250
        %vm256 = vcmask 1043592
        %vm257 = vcmask 1047556
        %vm258 = vmor %vm257, %vm256
        %259 = vst.msk [vmem:[#allocation2] sm:$0xff] %vm258, %v253
        %vm260 = vcmask 134144
        %261 = vst.msk [vmem:[#allocation2 + $0x8] sm:$0xf] %vm260, %v251
        %v262 = vld [vmem:[#allocation2] sm:$0xff]
        %v263 = vld [vmem:[%s2] ss:$8 sm:$0x3]
        %v265 = vlaneseq
        %v266 = vshrl.u32 %v265, 7
        %v267 = vsub.s32 0, %v266
        %v268 = vrot.slane %v263, %v267
        %v269 = vlaneseq
        %v270 = vshrl.u32 %v269, 7
        %v271 = vsub.s32 1, %v270
        %v272 = vrot.slane %v263, %v271
        %v273 = vcombine.low %v268, %v272
        %v275 = vmul.f32 %v262, %v273
        %v276 = vld [vmem:[%s234] sm:$0xf]
        %278 = vset.pattern.permute.xlu0 0
        %279 = vperm.xlu0 %278, %v276
        %v280 = vpop.permute.xlu0 %279
        %v283 = vlaneseq
        %v284 = vshrl.u32 %v283, 7
        %v285 = vsub.s32 0, %v284
        %v286 = vrot.slane %v275, %v285
        %v287 = vlaneseq
        %v288 = vshrl.u32 %v287, 7
        %v289 = vsub.s32 4, %v288
        %v290 = vrot.slane %v275, %v289
        %v293 = vlaneseq
        %v294 = vshrl.u32 %v293, 7
        %v295 = vsub.s32 0, %v294
        %v296 = vrot.slane %v286, %v295
        %v297 = vlaneseq
        %v298 = vshrl.u32 %v297, 7
        %v299 = vsub.s32 0, %v298
        %v300 = vrot.slane %v290, %v299
        %v301 = vmul.f32 %v280, %v296
        %v302 = vmul.f32 %v280, %v300
        %v303 = vadd.f32 %v301, 0.0
        %v304 = vadd.f32 %v302, 0.0
        %305 = vset.pattern.permute.xlu0 1
        %306 = vperm.xlu0 %305, %v276
        %v307 = vpop.permute.xlu0 %306
        %v309 = vlaneseq
        %v310 = vshrl.u32 %v309, 7
        %v311 = vsub.s32 1, %v310
        %v312 = vrot.slane %v275, %v311
        %v313 = vlaneseq
        %v314 = vshrl.u32 %v313, 7
        %v315 = vsub.s32 5, %v314
        %v316 = vrot.slane %v275, %v315
        %v319 = vlaneseq
        %v320 = vshrl.u32 %v319, 7
        %v321 = vsub.s32 1, %v320
        %v322 = vrot.slane %v312, %v321
        %v323 = vlaneseq
        %v324 = vshrl.u32 %v323, 7
        %v325 = vsub.s32 1, %v324
        %v326 = vrot.slane %v316, %v325
        %v327 = vmul.f32 %v307, %v322
        %v328 = vmul.f32 %v307, %v326
        %v329 = vadd.f32 %v303, %v327
        %v330 = vadd.f32 %v304, %v328
        %331 = vset.pattern.permute.xlu0 2
        %332 = vperm.xlu0 %331, %v276
        %v333 = vpop.permute.xlu0 %332
        %v335 = vlaneseq
        %v336 = vshrl.u32 %v335, 7
        %v337 = vsub.s32 2, %v336
        %v338 = vrot.slane %v275, %v337
        %v339 = vlaneseq
        %v340 = vshrl.u32 %v339, 7
        %v341 = vsub.s32 6, %v340
        %v342 = vrot.slane %v275, %v341
        %v345 = vlaneseq
        %v346 = vshrl.u32 %v345, 7
        %v347 = vsub.s32 2, %v346
        %v348 = vrot.slane %v338, %v347
        %v349 = vlaneseq
        %v350 = vshrl.u32 %v349, 7
        %v351 = vsub.s32 2, %v350
        %v352 = vrot.slane %v342, %v351
        %v353 = vmul.f32 %v333, %v348
        %v354 = vmul.f32 %v333, %v352
        %v355 = vadd.f32 %v329, %v353
        %v356 = vadd.f32 %v330, %v354
        %357 = vset.pattern.permute.xlu0 3
        %358 = vperm.xlu0 %357, %v276
        %v359 = vpop.permute.xlu0 %358
        %v361 = vlaneseq
        %v362 = vshrl.u32 %v361, 7
        %v363 = vsub.s32 3, %v362
        %v364 = vrot.slane %v275, %v363
        %v365 = vlaneseq
        %v366 = vshrl.u32 %v365, 7
        %v367 = vsub.s32 7, %v366
        %v368 = vrot.slane %v275, %v367
        %v371 = vlaneseq
        %v372 = vshrl.u32 %v371, 7
        %v373 = vsub.s32 3, %v372
        %v374 = vrot.slane %v364, %v373
        %v375 = vlaneseq
        %v376 = vshrl.u32 %v375, 7
        %v377 = vsub.s32 3, %v376
        %v378 = vrot.slane %v368, %v377
        %v379 = vmul.f32 %v359, %v374
        %v380 = vmul.f32 %v359, %v378
        %v381 = vadd.f32 %v355, %v379
        %v382 = vadd.f32 %v356, %v380
        %v383 = vld [vmem:[#allocation2] sm:$0xff]
        %v384 = vld [vmem:[#allocation2 + $0x8] sm:$0xf]
        %s385 = scalar_lea.vmem %s234, 4
        %v386 = vld [vmem:[%s385] sm:$0xf]
        %388 = vset.pattern.permute.xlu0 0
        %389 = vperm.xlu0 %388, %v386
        %v390 = vpop.permute.xlu0 %389
        %v394 = vlaneseq
        %v395 = vshrl.u32 %v394, 7
        %v396 = vsub.s32 0, %v395
        %v397 = vrot.slane %v383, %v396
        %v398 = vlaneseq
        %v399 = vshrl.u32 %v398, 7
        %v400 = vsub.s32 4, %v399
        %v401 = vrot.slane %v383, %v400
        %v402 = vlaneseq
        %v403 = vshrl.u32 %v402, 7
        %v404 = vsub.s32 0, %v403
        %v405 = vrot.slane %v384, %v404
        %v409 = vlaneseq
        %v410 = vshrl.u32 %v409, 7
        %v411 = vsub.s32 0, %v410
        %v412 = vrot.slane %v397, %v411
        %v413 = vlaneseq
        %v414 = vshrl.u32 %v413, 7
        %v415 = vsub.s32 0, %v414
        %v416 = vrot.slane %v401, %v415
        %v417 = vlaneseq
        %v418 = vshrl.u32 %v417, 7
        %v419 = vsub.s32 0, %v418
        %v420 = vrot.slane %v405, %v419
        %v421 = vmul.f32 %v390, %v412
        %v422 = vmul.f32 %v390, %v416
        %v423 = vmul.f32 %v390, %v420
        %427 = vrot.lane.b32.xlu0 %v421, 127
        %v428 = vpop.permute.xlu0 %427
        %429 = vrot.lane.b32.xlu0 %v422, 127
        %v430 = vpop.permute.xlu0 %429
        %431 = vrot.lane.b32.xlu0 %v423, 127
        %v432 = vpop.permute.xlu0 %431
        %vm433 = vcmask 1039360
        %v434 = vsel %vm433, %v428, %v430
        %v435 = vsel %vm433, %v430, %v432
        %v438 = vadd.f32 %v381, %v434
        %v439 = vadd.f32 %v382, %v435
        %440 = vset.pattern.permute.xlu0 1
        %441 = vperm.xlu0 %440, %v386
        %v442 = vpop.permute.xlu0 %441
        %v444 = vlaneseq
        %v445 = vshrl.u32 %v444, 7
        %v446 = vsub.s32 1, %v445
        %v447 = vrot.slane %v383, %v446
        %v448 = vlaneseq
        %v449 = vshrl.u32 %v448, 7
        %v450 = vsub.s32 5, %v449
        %v451 = vrot.slane %v383, %v450
        %v452 = vlaneseq
        %v453 = vshrl.u32 %v452, 7
        %v454 = vsub.s32 1, %v453
        %v455 = vrot.slane %v384, %v454
        %v459 = vlaneseq
        %v460 = vshrl.u32 %v459, 7
        %v461 = vsub.s32 1, %v460
        %v462 = vrot.slane %v447, %v461
        %v463 = vlaneseq
        %v464 = vshrl.u32 %v463, 7
        %v465 = vsub.s32 1, %v464
        %v466 = vrot.slane %v451, %v465
        %v467 = vlaneseq
        %v468 = vshrl.u32 %v467, 7
        %v469 = vsub.s32 1, %v468
        %v470 = vrot.slane %v455, %v469
        %v471 = vmul.f32 %v442, %v462
        %v472 = vmul.f32 %v442, %v466
        %v473 = vmul.f32 %v442, %v470
        %477 = vrot.lane.b32.xlu0 %v471, 127
        %v478 = vpop.permute.xlu0 %477
        %479 = vrot.lane.b32.xlu0 %v472, 127
        %v480 = vpop.permute.xlu0 %479
        %481 = vrot.lane.b32.xlu0 %v473, 127
        %v482 = vpop.permute.xlu0 %481
        %v483 = vsel %vm433, %v478, %v480
        %v484 = vsel %vm433, %v480, %v482
        %v487 = vadd.f32 %v438, %v483
        %v488 = vadd.f32 %v439, %v484
        %489 = vset.pattern.permute.xlu0 2
        %490 = vperm.xlu0 %489, %v386
        %v491 = vpop.permute.xlu0 %490
        %v493 = vlaneseq
        %v494 = vshrl.u32 %v493, 7
        %v495 = vsub.s32 2, %v494
        %v496 = vrot.slane %v383, %v495
        %v497 = vlaneseq
        %v498 = vshrl.u32 %v497, 7
        %v499 = vsub.s32 6, %v498
        %v500 = vrot.slane %v383, %v499
        %v501 = vlaneseq
        %v502 = vshrl.u32 %v501, 7
        %v503 = vsub.s32 2, %v502
        %v504 = vrot.slane %v384, %v503
        %v508 = vlaneseq
        %v509 = vshrl.u32 %v508, 7
        %v510 = vsub.s32 2, %v509
        %v511 = vrot.slane %v496, %v510
        %v512 = vlaneseq
        %v513 = vshrl.u32 %v512, 7
        %v514 = vsub.s32 2, %v513
        %v515 = vrot.slane %v500, %v514
        %v516 = vlaneseq
        %v517 = vshrl.u32 %v516, 7
        %v518 = vsub.s32 2, %v517
        %v519 = vrot.slane %v504, %v518
        %v520 = vmul.f32 %v491, %v511
        %v521 = vmul.f32 %v491, %v515
        %v522 = vmul.f32 %v491, %v519
        %526 = vrot.lane.b32.xlu0 %v520, 127
        %v527 = vpop.permute.xlu0 %526
        %528 = vrot.lane.b32.xlu0 %v521, 127
        %v529 = vpop.permute.xlu0 %528
        %530 = vrot.lane.b32.xlu0 %v522, 127
        %v531 = vpop.permute.xlu0 %530
        %v532 = vsel %vm433, %v527, %v529
        %v533 = vsel %vm433, %v529, %v531
        %v536 = vadd.f32 %v487, %v532
        %v537 = vadd.f32 %v488, %v533
        %538 = vset.pattern.permute.xlu0 3
        %539 = vperm.xlu0 %538, %v386
        %v540 = vpop.permute.xlu0 %539
        %v542 = vlaneseq
        %v543 = vshrl.u32 %v542, 7
        %v544 = vsub.s32 3, %v543
        %v545 = vrot.slane %v383, %v544
        %v546 = vlaneseq
        %v547 = vshrl.u32 %v546, 7
        %v548 = vsub.s32 7, %v547
        %v549 = vrot.slane %v383, %v548
        %v550 = vlaneseq
        %v551 = vshrl.u32 %v550, 7
        %v552 = vsub.s32 3, %v551
        %v553 = vrot.slane %v384, %v552
        %v557 = vlaneseq
        %v558 = vshrl.u32 %v557, 7
        %v559 = vsub.s32 3, %v558
        %v560 = vrot.slane %v545, %v559
        %v561 = vlaneseq
        %v562 = vshrl.u32 %v561, 7
        %v563 = vsub.s32 3, %v562
        %v564 = vrot.slane %v549, %v563
        %v565 = vlaneseq
        %v566 = vshrl.u32 %v565, 7
        %v567 = vsub.s32 3, %v566
        %v568 = vrot.slane %v553, %v567
        %v569 = vmul.f32 %v540, %v560
        %v570 = vmul.f32 %v540, %v564
        %v571 = vmul.f32 %v540, %v568
        %575 = vrot.lane.b32.xlu0 %v569, 127
        %v576 = vpop.permute.xlu0 %575
        %577 = vrot.lane.b32.xlu0 %v570, 127
        %v578 = vpop.permute.xlu0 %577
        %579 = vrot.lane.b32.xlu0 %v571, 127
        %v580 = vpop.permute.xlu0 %579
        %v581 = vsel %vm433, %v576, %v578
        %v582 = vsel %vm433, %v578, %v580
        %v585 = vadd.f32 %v536, %v581
        %v586 = vadd.f32 %v537, %v582
        %s587 = scalar_lea.vmem %s2, 2
        %v588 = vld [vmem:[%s587] ss:$8 sm:$0x3]
        %v590 = vlaneseq
        %v591 = vshrl.u32 %v590, 7
        %v592 = vsub.s32 0, %v591
        %v593 = vrot.slane %v588, %v592
        %v594 = vlaneseq
        %v595 = vshrl.u32 %v594, 7
        %v596 = vsub.s32 1, %v595
        %v597 = vrot.slane %v588, %v596
        %v598 = vcombine.low %v593, %v597
        %599 = vrot.lane.b32.xlu0 %v598, 2
        %v600 = vpop.permute.xlu0 %599
        %v601 = vrot.slane %v600, 4
        %vm602 = vcmask 15360
        %v603 = vsel %vm602, %v601, %v600
        %v606 = vmul.f32 %v383, %v603
        %v607 = vmul.f32 %v384, %v601
        %s608 = scalar_lea.vmem %s234, 8
        %v609 = vld [vmem:[%s608] sm:$0xf]
        %611 = vset.pattern.permute.xlu0 0
        %612 = vperm.xlu0 %611, %v609
        %v613 = vpop.permute.xlu0 %612
        %v617 = vlaneseq
        %v618 = vshrl.u32 %v617, 7
        %v619 = vsub.s32 0, %v618
        %v620 = vrot.slane %v606, %v619
        %v621 = vlaneseq
        %v622 = vshrl.u32 %v621, 7
        %v623 = vsub.s32 4, %v622
        %v624 = vrot.slane %v606, %v623
        %v625 = vlaneseq
        %v626 = vshrl.u32 %v625, 7
        %v627 = vsub.s32 0, %v626
        %v628 = vrot.slane %v607, %v627
        %v632 = vlaneseq
        %v633 = vshrl.u32 %v632, 7
        %v634 = vsub.s32 0, %v633
        %v635 = vrot.slane %v620, %v634
        %v636 = vlaneseq
        %v637 = vshrl.u32 %v636, 7
        %v638 = vsub.s32 0, %v637
        %v639 = vrot.slane %v624, %v638
        %v640 = vlaneseq
        %v641 = vshrl.u32 %v640, 7
        %v642 = vsub.s32 0, %v641
        %v643 = vrot.slane %v628, %v642
        %v644 = vmul.f32 %v613, %v635
        %v645 = vmul.f32 %v613, %v639
        %v646 = vmul.f32 %v613, %v643
        %650 = vrot.lane.b32.xlu0 %v644, 126
        %v651 = vpop.permute.xlu0 %650
        %652 = vrot.lane.b32.xlu0 %v645, 126
        %v653 = vpop.permute.xlu0 %652
        %654 = vrot.lane.b32.xlu0 %v646, 126
        %v655 = vpop.permute.xlu0 %654
        %vm656 = vcmask 1031168
        %v657 = vsel %vm656, %v651, %v653
        %v658 = vsel %vm656, %v653, %v655
        %v661 = vadd.f32 %v585, %v657
        %v662 = vadd.f32 %v586, %v658
        %663 = vset.pattern.permute.xlu0 1
        %664 = vperm.xlu0 %663, %v609
        %v665 = vpop.permute.xlu0 %664
        %v667 = vlaneseq
        %v668 = vshrl.u32 %v667, 7
        %v669 = vsub.s32 1, %v668
        %v670 = vrot.slane %v606, %v669
        %v671 = vlaneseq
        %v672 = vshrl.u32 %v671, 7
        %v673 = vsub.s32 5, %v672
        %v674 = vrot.slane %v606, %v673
        %v675 = vlaneseq
        %v676 = vshrl.u32 %v675, 7
        %v677 = vsub.s32 1, %v676
        %v678 = vrot.slane %v607, %v677
        %v682 = vlaneseq
        %v683 = vshrl.u32 %v682, 7
        %v684 = vsub.s32 1, %v683
        %v685 = vrot.slane %v670, %v684
        %v686 = vlaneseq
        %v687 = vshrl.u32 %v686, 7
        %v688 = vsub.s32 1, %v687
        %v689 = vrot.slane %v674, %v688
        %v690 = vlaneseq
        %v691 = vshrl.u32 %v690, 7
        %v692 = vsub.s32 1, %v691
        %v693 = vrot.slane %v678, %v692
        %v694 = vmul.f32 %v665, %v685
        %v695 = vmul.f32 %v665, %v689
        %v696 = vmul.f32 %v665, %v693
        %700 = vrot.lane.b32.xlu0 %v694, 126
        %v701 = vpop.permute.xlu0 %700
        %702 = vrot.lane.b32.xlu0 %v695, 126
        %v703 = vpop.permute.xlu0 %702
        %704 = vrot.lane.b32.xlu0 %v696, 126
        %v705 = vpop.permute.xlu0 %704
        %v706 = vsel %vm656, %v701, %v703
        %v707 = vsel %vm656, %v703, %v705
        %v710 = vadd.f32 %v661, %v706
        %v711 = vadd.f32 %v662, %v707
        %712 = vset.pattern.permute.xlu0 2
        %713 = vperm.xlu0 %712, %v609
        %v714 = vpop.permute.xlu0 %713
        %v716 = vlaneseq
        %v717 = vshrl.u32 %v716, 7
        %v718 = vsub.s32 2, %v717
        %v719 = vrot.slane %v606, %v718
        %v720 = vlaneseq
        %v721 = vshrl.u32 %v720, 7
        %v722 = vsub.s32 6, %v721
        %v723 = vrot.slane %v606, %v722
        %v724 = vlaneseq
        %v725 = vshrl.u32 %v724, 7
        %v726 = vsub.s32 2, %v725
        %v727 = vrot.slane %v607, %v726
        %v731 = vlaneseq
        %v732 = vshrl.u32 %v731, 7
        %v733 = vsub.s32 2, %v732
        %v734 = vrot.slane %v719, %v733
        %v735 = vlaneseq
        %v736 = vshrl.u32 %v735, 7
        %v737 = vsub.s32 2, %v736
        %v738 = vrot.slane %v723, %v737
        %v739 = vlaneseq
        %v740 = vshrl.u32 %v739, 7
        %v741 = vsub.s32 2, %v740
        %v742 = vrot.slane %v727, %v741
        %v743 = vmul.f32 %v714, %v734
        %v744 = vmul.f32 %v714, %v738
        %v745 = vmul.f32 %v714, %v742
        %749 = vrot.lane.b32.xlu0 %v743, 126
        %v750 = vpop.permute.xlu0 %749
        %751 = vrot.lane.b32.xlu0 %v744, 126
        %v752 = vpop.permute.xlu0 %751
        %753 = vrot.lane.b32.xlu0 %v745, 126
        %v754 = vpop.permute.xlu0 %753
        %v755 = vsel %vm656, %v750, %v752
        %v756 = vsel %vm656, %v752, %v754
        %v759 = vadd.f32 %v710, %v755
        %v760 = vadd.f32 %v711, %v756
        %761 = vset.pattern.permute.xlu0 3
        %762 = vperm.xlu0 %761, %v609
        %v763 = vpop.permute.xlu0 %762
        %v765 = vlaneseq
        %v766 = vshrl.u32 %v765, 7
        %v767 = vsub.s32 3, %v766
        %v768 = vrot.slane %v606, %v767
        %v769 = vlaneseq
        %v770 = vshrl.u32 %v769, 7
        %v771 = vsub.s32 7, %v770
        %v772 = vrot.slane %v606, %v771
        %v773 = vlaneseq
        %v774 = vshrl.u32 %v773, 7
        %v775 = vsub.s32 3, %v774
        %v776 = vrot.slane %v607, %v775
        %v780 = vlaneseq
        %v781 = vshrl.u32 %v780, 7
        %v782 = vsub.s32 3, %v781
        %v783 = vrot.slane %v768, %v782
        %v784 = vlaneseq
        %v785 = vshrl.u32 %v784, 7
        %v786 = vsub.s32 3, %v785
        %v787 = vrot.slane %v772, %v786
        %v788 = vlaneseq
        %v789 = vshrl.u32 %v788, 7
        %v790 = vsub.s32 3, %v789
        %v791 = vrot.slane %v776, %v790
        %v792 = vmul.f32 %v763, %v783
        %v793 = vmul.f32 %v763, %v787
        %v794 = vmul.f32 %v763, %v791
        %798 = vrot.lane.b32.xlu0 %v792, 126
        %v799 = vpop.permute.xlu0 %798
        %800 = vrot.lane.b32.xlu0 %v793, 126
        %v801 = vpop.permute.xlu0 %800
        %802 = vrot.lane.b32.xlu0 %v794, 126
        %v803 = vpop.permute.xlu0 %802
        %v804 = vsel %vm656, %v799, %v801
        %v805 = vsel %vm656, %v801, %v803
        %v808 = vadd.f32 %v759, %v804
        %v809 = vadd.f32 %v760, %v805
        %v810 = vld [vmem:[#allocation2] sm:$0xff]
        %v811 = vld [vmem:[#allocation2 + $0x8] sm:$0xf]
        %s812 = scalar_lea.vmem %s2, 3
        %v813 = vld [vmem:[%s812] ss:$8 sm:$0x3]
        %v815 = vlaneseq
        %v816 = vshrl.u32 %v815, 7
        %v817 = vsub.s32 0, %v816
        %v818 = vrot.slane %v813, %v817
        %v819 = vlaneseq
        %v820 = vshrl.u32 %v819, 7
        %v821 = vsub.s32 1, %v820
        %v822 = vrot.slane %v813, %v821
        %v823 = vcombine.low %v818, %v822
        %824 = vrot.lane.b32.xlu0 %v823, 16
        %v825 = vpop.permute.xlu0 %824
        %v826 = vrot.slane %v825, 4
        %vm827 = vcmask 130048
        %v828 = vsel %vm827, %v826, %v825
        %v831 = vmul.f32 %v810, %v828
        %v832 = vmul.f32 %v811, %v826
        %s833 = scalar_lea.vmem %s234, 12
        %v834 = vld [vmem:[%s833] sm:$0xf]
        %836 = vset.pattern.permute.xlu0 0
        %837 = vperm.xlu0 %836, %v834
        %v838 = vpop.permute.xlu0 %837
        %v842 = vlaneseq
        %v843 = vshrl.u32 %v842, 7
        %v844 = vsub.s32 0, %v843
        %v845 = vrot.slane %v831, %v844
        %v846 = vlaneseq
        %v847 = vshrl.u32 %v846, 7
        %v848 = vsub.s32 4, %v847
        %v849 = vrot.slane %v831, %v848
        %v850 = vlaneseq
        %v851 = vshrl.u32 %v850, 7
        %v852 = vsub.s32 0, %v851
        %v853 = vrot.slane %v832, %v852
        %v857 = vlaneseq
        %v858 = vshrl.u32 %v857, 7
        %v859 = vsub.s32 0, %v858
        %v860 = vrot.slane %v845, %v859
        %v861 = vlaneseq
        %v862 = vshrl.u32 %v861, 7
        %v863 = vsub.s32 0, %v862
        %v864 = vrot.slane %v849, %v863
        %v865 = vlaneseq
        %v866 = vshrl.u32 %v865, 7
        %v867 = vsub.s32 0, %v866
        %v868 = vrot.slane %v853, %v867
        %v869 = vmul.f32 %v838, %v860
        %v870 = vmul.f32 %v838, %v864
        %v871 = vmul.f32 %v838, %v868
        %875 = vrot.lane.b32.xlu0 %v869, 112
        %v876 = vpop.permute.xlu0 %875
        %877 = vrot.lane.b32.xlu0 %v870, 112
        %v878 = vpop.permute.xlu0 %877
        %879 = vrot.lane.b32.xlu0 %v871, 112
        %v880 = vpop.permute.xlu0 %879
        %vm881 = vcmask 916480
        %v882 = vsel %vm881, %v876, %v878
        %v883 = vsel %vm881, %v878, %v880
        %v886 = vadd.f32 %v808, %v882
        %v887 = vadd.f32 %v809, %v883
        %888 = vset.pattern.permute.xlu0 1
        %889 = vperm.xlu0 %888, %v834
        %v890 = vpop.permute.xlu0 %889
        %v892 = vlaneseq
        %v893 = vshrl.u32 %v892, 7
        %v894 = vsub.s32 1, %v893
        %v895 = vrot.slane %v831, %v894
        %v896 = vlaneseq
        %v897 = vshrl.u32 %v896, 7
        %v898 = vsub.s32 5, %v897
        %v899 = vrot.slane %v831, %v898
        %v900 = vlaneseq
        %v901 = vshrl.u32 %v900, 7
        %v902 = vsub.s32 1, %v901
        %v903 = vrot.slane %v832, %v902
        %v907 = vlaneseq
        %v908 = vshrl.u32 %v907, 7
        %v909 = vsub.s32 1, %v908
        %v910 = vrot.slane %v895, %v909
        %v911 = vlaneseq
        %v912 = vshrl.u32 %v911, 7
        %v913 = vsub.s32 1, %v912
        %v914 = vrot.slane %v899, %v913
        %v915 = vlaneseq
        %v916 = vshrl.u32 %v915, 7
        %v917 = vsub.s32 1, %v916
        %v918 = vrot.slane %v903, %v917
        %v919 = vmul.f32 %v890, %v910
        %v920 = vmul.f32 %v890, %v914
        %v921 = vmul.f32 %v890, %v918
        %925 = vrot.lane.b32.xlu0 %v919, 112
        %v926 = vpop.permute.xlu0 %925
        %927 = vrot.lane.b32.xlu0 %v920, 112
        %v928 = vpop.permute.xlu0 %927
        %929 = vrot.lane.b32.xlu0 %v921, 112
        %v930 = vpop.permute.xlu0 %929
        %v931 = vsel %vm881, %v926, %v928
        %v932 = vsel %vm881, %v928, %v930
        %v935 = vadd.f32 %v886, %v931
        %v936 = vadd.f32 %v887, %v932
        %937 = vset.pattern.permute.xlu0 2
        %938 = vperm.xlu0 %937, %v834
        %v939 = vpop.permute.xlu0 %938
        %v941 = vlaneseq
        %v942 = vshrl.u32 %v941, 7
        %v943 = vsub.s32 2, %v942
        %v944 = vrot.slane %v831, %v943
        %v945 = vlaneseq
        %v946 = vshrl.u32 %v945, 7
        %v947 = vsub.s32 6, %v946
        %v948 = vrot.slane %v831, %v947
        %v949 = vlaneseq
        %v950 = vshrl.u32 %v949, 7
        %v951 = vsub.s32 2, %v950
        %v952 = vrot.slane %v832, %v951
        %v956 = vlaneseq
        %v957 = vshrl.u32 %v956, 7
        %v958 = vsub.s32 2, %v957
        %v959 = vrot.slane %v944, %v958
        %v960 = vlaneseq
        %v961 = vshrl.u32 %v960, 7
        %v962 = vsub.s32 2, %v961
        %v963 = vrot.slane %v948, %v962
        %v964 = vlaneseq
        %v965 = vshrl.u32 %v964, 7
        %v966 = vsub.s32 2, %v965
        %v967 = vrot.slane %v952, %v966
        %v968 = vmul.f32 %v939, %v959
        %v969 = vmul.f32 %v939, %v963
        %v970 = vmul.f32 %v939, %v967
        %974 = vrot.lane.b32.xlu0 %v968, 112
        %v975 = vpop.permute.xlu0 %974
        %976 = vrot.lane.b32.xlu0 %v969, 112
        %v977 = vpop.permute.xlu0 %976
        %978 = vrot.lane.b32.xlu0 %v970, 112
        %v979 = vpop.permute.xlu0 %978
        %v980 = vsel %vm881, %v975, %v977
        %v981 = vsel %vm881, %v977, %v979
        %v984 = vadd.f32 %v935, %v980
        %v985 = vadd.f32 %v936, %v981
        %986 = vset.pattern.permute.xlu0 3
        %987 = vperm.xlu0 %986, %v834
        %v988 = vpop.permute.xlu0 %987
        %v990 = vlaneseq
        %v991 = vshrl.u32 %v990, 7
        %v992 = vsub.s32 3, %v991
        %v993 = vrot.slane %v831, %v992
        %v994 = vlaneseq
        %v995 = vshrl.u32 %v994, 7
        %v996 = vsub.s32 7, %v995
        %v997 = vrot.slane %v831, %v996
        %v998 = vlaneseq
        %v999 = vshrl.u32 %v998, 7
        %v1000 = vsub.s32 3, %v999
        %v1001 = vrot.slane %v832, %v1000
        %v1005 = vlaneseq
        %v1006 = vshrl.u32 %v1005, 7
        %v1007 = vsub.s32 3, %v1006
        %v1008 = vrot.slane %v993, %v1007
        %v1009 = vlaneseq
        %v1010 = vshrl.u32 %v1009, 7
        %v1011 = vsub.s32 3, %v1010
        %v1012 = vrot.slane %v997, %v1011
        %v1013 = vlaneseq
        %v1014 = vshrl.u32 %v1013, 7
        %v1015 = vsub.s32 3, %v1014
        %v1016 = vrot.slane %v1001, %v1015
        %v1017 = vmul.f32 %v988, %v1008
        %v1018 = vmul.f32 %v988, %v1012
        %v1019 = vmul.f32 %v988, %v1016
        %1023 = vrot.lane.b32.xlu0 %v1017, 112
        %v1024 = vpop.permute.xlu0 %1023
        %1025 = vrot.lane.b32.xlu0 %v1018, 112
        %v1026 = vpop.permute.xlu0 %1025
        %1027 = vrot.lane.b32.xlu0 %v1019, 112
        %v1028 = vpop.permute.xlu0 %1027
        %v1029 = vsel %vm881, %v1024, %v1026
        %v1030 = vsel %vm881, %v1026, %v1028
        %v1033 = vadd.f32 %v984, %v1029
        %v1034 = vadd.f32 %v985, %v1030
        %v1035 = vld [vmem:[#allocation2] sm:$0xff]
        %v1036 = vld [vmem:[#allocation2 + $0x8] sm:$0xf]
        %s1037 = scalar_lea.vmem %s234, 16
        %v1038 = vld [vmem:[%s1037] sm:$0xf]
        %1040 = vset.pattern.permute.xlu0 0
        %1041 = vperm.xlu0 %1040, %v1038
        %v1042 = vpop.permute.xlu0 %1041
        %v1046 = vlaneseq
        %v1047 = vshrl.u32 %v1046, 7
        %v1048 = vsub.s32 0, %v1047
        %v1049 = vrot.slane %v1035, %v1048
        %v1050 = vlaneseq
        %v1051 = vshrl.u32 %v1050, 7
        %v1052 = vsub.s32 4, %v1051
        %v1053 = vrot.slane %v1035, %v1052
        %v1054 = vlaneseq
        %v1055 = vshrl.u32 %v1054, 7
        %v1056 = vsub.s32 0, %v1055
        %v1057 = vrot.slane %v1036, %v1056
        %v1061 = vlaneseq
        %v1062 = vshrl.u32 %v1061, 7
        %v1063 = vsub.s32 0, %v1062
        %v1064 = vrot.slane %v1049, %v1063
        %v1065 = vlaneseq
        %v1066 = vshrl.u32 %v1065, 7
        %v1067 = vsub.s32 0, %v1066
        %v1068 = vrot.slane %v1053, %v1067
        %v1069 = vlaneseq
        %v1070 = vshrl.u32 %v1069, 7
        %v1071 = vsub.s32 0, %v1070
        %v1072 = vrot.slane %v1057, %v1071
        %v1073 = vmul.f32 %v1042, %v1064
        %v1074 = vmul.f32 %v1042, %v1068
        %v1075 = vmul.f32 %v1042, %v1072
        %1079 = vrot.lane.b32.xlu0 %v1073, 111
        %v1080 = vpop.permute.xlu0 %1079
        %1081 = vrot.lane.b32.xlu0 %v1074, 111
        %v1082 = vpop.permute.xlu0 %1081
        %1083 = vrot.lane.b32.xlu0 %v1075, 111
        %v1084 = vpop.permute.xlu0 %1083
        %vm1085 = vcmask 908288
        %v1086 = vsel %vm1085, %v1080, %v1082
        %v1087 = vsel %vm1085, %v1082, %v1084
        %v1090 = vadd.f32 %v1033, %v1086
        %v1091 = vadd.f32 %v1034, %v1087
        %1092 = vset.pattern.permute.xlu0 1
        %1093 = vperm.xlu0 %1092, %v1038
        %v1094 = vpop.permute.xlu0 %1093
        %v1096 = vlaneseq
        %v1097 = vshrl.u32 %v1096, 7
        %v1098 = vsub.s32 1, %v1097
        %v1099 = vrot.slane %v1035, %v1098
        %v1100 = vlaneseq
        %v1101 = vshrl.u32 %v1100, 7
        %v1102 = vsub.s32 5, %v1101
        %v1103 = vrot.slane %v1035, %v1102
        %v1104 = vlaneseq
        %v1105 = vshrl.u32 %v1104, 7
        %v1106 = vsub.s32 1, %v1105
        %v1107 = vrot.slane %v1036, %v1106
        %v1111 = vlaneseq
        %v1112 = vshrl.u32 %v1111, 7
        %v1113 = vsub.s32 1, %v1112
        %v1114 = vrot.slane %v1099, %v1113
        %v1115 = vlaneseq
        %v1116 = vshrl.u32 %v1115, 7
        %v1117 = vsub.s32 1, %v1116
        %v1118 = vrot.slane %v1103, %v1117
        %v1119 = vlaneseq
        %v1120 = vshrl.u32 %v1119, 7
        %v1121 = vsub.s32 1, %v1120
        %v1122 = vrot.slane %v1107, %v1121
        %v1123 = vmul.f32 %v1094, %v1114
        %v1124 = vmul.f32 %v1094, %v1118
        %v1125 = vmul.f32 %v1094, %v1122
        %1129 = vrot.lane.b32.xlu0 %v1123, 111
        %v1130 = vpop.permute.xlu0 %1129
        %1131 = vrot.lane.b32.xlu0 %v1124, 111
        %v1132 = vpop.permute.xlu0 %1131
        %1133 = vrot.lane.b32.xlu0 %v1125, 111
        %v1134 = vpop.permute.xlu0 %1133
        %v1135 = vsel %vm1085, %v1130, %v1132
        %v1136 = vsel %vm1085, %v1132, %v1134
        %v1139 = vadd.f32 %v1090, %v1135
        %v1140 = vadd.f32 %v1091, %v1136
        %1141 = vset.pattern.permute.xlu0 2
        %1142 = vperm.xlu0 %1141, %v1038
        %v1143 = vpop.permute.xlu0 %1142
        %v1145 = vlaneseq
        %v1146 = vshrl.u32 %v1145, 7
        %v1147 = vsub.s32 2, %v1146
        %v1148 = vrot.slane %v1035, %v1147
        %v1149 = vlaneseq
        %v1150 = vshrl.u32 %v1149, 7
        %v1151 = vsub.s32 6, %v1150
        %v1152 = vrot.slane %v1035, %v1151
        %v1153 = vlaneseq
        %v1154 = vshrl.u32 %v1153, 7
        %v1155 = vsub.s32 2, %v1154
        %v1156 = vrot.slane %v1036, %v1155
        %v1160 = vlaneseq
        %v1161 = vshrl.u32 %v1160, 7
        %v1162 = vsub.s32 2, %v1161
        %v1163 = vrot.slane %v1148, %v1162
        %v1164 = vlaneseq
        %v1165 = vshrl.u32 %v1164, 7
        %v1166 = vsub.s32 2, %v1165
        %v1167 = vrot.slane %v1152, %v1166
        %v1168 = vlaneseq
        %v1169 = vshrl.u32 %v1168, 7
        %v1170 = vsub.s32 2, %v1169
        %v1171 = vrot.slane %v1156, %v1170
        %v1172 = vmul.f32 %v1143, %v1163
        %v1173 = vmul.f32 %v1143, %v1167
        %v1174 = vmul.f32 %v1143, %v1171
        %1178 = vrot.lane.b32.xlu0 %v1172, 111
        %v1179 = vpop.permute.xlu0 %1178
        %1180 = vrot.lane.b32.xlu0 %v1173, 111
        %v1181 = vpop.permute.xlu0 %1180
        %1182 = vrot.lane.b32.xlu0 %v1174, 111
        %v1183 = vpop.permute.xlu0 %1182
        %v1184 = vsel %vm1085, %v1179, %v1181
        %v1185 = vsel %vm1085, %v1181, %v1183
        %v1188 = vadd.f32 %v1139, %v1184
        %v1189 = vadd.f32 %v1140, %v1185
        %1190 = vset.pattern.permute.xlu0 3
        %1191 = vperm.xlu0 %1190, %v1038
        %v1192 = vpop.permute.xlu0 %1191
        %v1194 = vlaneseq
        %v1195 = vshrl.u32 %v1194, 7
        %v1196 = vsub.s32 3, %v1195
        %v1197 = vrot.slane %v1035, %v1196
        %v1198 = vlaneseq
        %v1199 = vshrl.u32 %v1198, 7
        %v1200 = vsub.s32 7, %v1199
        %v1201 = vrot.slane %v1035, %v1200
        %v1202 = vlaneseq
        %v1203 = vshrl.u32 %v1202, 7
        %v1204 = vsub.s32 3, %v1203
        %v1205 = vrot.slane %v1036, %v1204
        %v1209 = vlaneseq
        %v1210 = vshrl.u32 %v1209, 7
        %v1211 = vsub.s32 3, %v1210
        %v1212 = vrot.slane %v1197, %v1211
        %v1213 = vlaneseq
        %v1214 = vshrl.u32 %v1213, 7
        %v1215 = vsub.s32 3, %v1214
        %v1216 = vrot.slane %v1201, %v1215
        %v1217 = vlaneseq
        %v1218 = vshrl.u32 %v1217, 7
        %v1219 = vsub.s32 3, %v1218
        %v1220 = vrot.slane %v1205, %v1219
        %v1221 = vmul.f32 %v1192, %v1212
        %v1222 = vmul.f32 %v1192, %v1216
        %v1223 = vmul.f32 %v1192, %v1220
        %1227 = vrot.lane.b32.xlu0 %v1221, 111
        %v1228 = vpop.permute.xlu0 %1227
        %1229 = vrot.lane.b32.xlu0 %v1222, 111
        %v1230 = vpop.permute.xlu0 %1229
        %1231 = vrot.lane.b32.xlu0 %v1223, 111
        %v1232 = vpop.permute.xlu0 %1231
        %v1233 = vsel %vm1085, %v1228, %v1230
        %v1234 = vsel %vm1085, %v1230, %v1232
        %v1237 = vadd.f32 %v1188, %v1233
        %v1238 = vadd.f32 %v1189, %v1234
        %s1239 = scalar_lea.vmem %s2, 5
        %v1240 = vld [vmem:[%s1239] ss:$8 sm:$0x3]
        %v1242 = vlaneseq
        %v1243 = vshrl.u32 %v1242, 7
        %v1244 = vsub.s32 0, %v1243
        %v1245 = vrot.slane %v1240, %v1244
        %v1246 = vlaneseq
        %v1247 = vshrl.u32 %v1246, 7
        %v1248 = vsub.s32 1, %v1247
        %v1249 = vrot.slane %v1240, %v1248
        %v1250 = vcombine.low %v1245, %v1249
        %1251 = vrot.lane.b32.xlu0 %v1250, 18
        %v1252 = vpop.permute.xlu0 %1251
        %v1253 = vrot.slane %v1252, 4
        %vm1254 = vcmask 146432
        %v1255 = vsel %vm1254, %v1253, %v1252
        %v1258 = vmul.f32 %v1035, %v1255
        %v1259 = vmul.f32 %v1036, %v1253
        %s1260 = scalar_lea.vmem %s234, 20
        %v1261 = vld [vmem:[%s1260] sm:$0xf]
        %1263 = vset.pattern.permute.xlu0 0
        %1264 = vperm.xlu0 %1263, %v1261
        %v1265 = vpop.permute.xlu0 %1264
        %v1269 = vlaneseq
        %v1270 = vshrl.u32 %v1269, 7
        %v1271 = vsub.s32 0, %v1270
        %v1272 = vrot.slane %v1258, %v1271
        %v1273 = vlaneseq
        %v1274 = vshrl.u32 %v1273, 7
        %v1275 = vsub.s32 4, %v1274
        %v1276 = vrot.slane %v1258, %v1275
        %v1277 = vlaneseq
        %v1278 = vshrl.u32 %v1277, 7
        %v1279 = vsub.s32 0, %v1278
        %v1280 = vrot.slane %v1259, %v1279
        %v1284 = vlaneseq
        %v1285 = vshrl.u32 %v1284, 7
        %v1286 = vsub.s32 0, %v1285
        %v1287 = vrot.slane %v1272, %v1286
        %v1288 = vlaneseq
        %v1289 = vshrl.u32 %v1288, 7
        %v1290 = vsub.s32 0, %v1289
        %v1291 = vrot.slane %v1276, %v1290
        %v1292 = vlaneseq
        %v1293 = vshrl.u32 %v1292, 7
        %v1294 = vsub.s32 0, %v1293
        %v1295 = vrot.slane %v1280, %v1294
        %v1296 = vmul.f32 %v1265, %v1287
        %v1297 = vmul.f32 %v1265, %v1291
        %v1298 = vmul.f32 %v1265, %v1295
        %1302 = vrot.lane.b32.xlu0 %v1296, 110
        %v1303 = vpop.permute.xlu0 %1302
        %1304 = vrot.lane.b32.xlu0 %v1297, 110
        %v1305 = vpop.permute.xlu0 %1304
        %1306 = vrot.lane.b32.xlu0 %v1298, 110
        %v1307 = vpop.permute.xlu0 %1306
        %vm1308 = vcmask 900096
        %v1309 = vsel %vm1308, %v1303, %v1305
        %v1310 = vsel %vm1308, %v1305, %v1307
        %v1313 = vadd.f32 %v1237, %v1309
        %v1314 = vadd.f32 %v1238, %v1310
        %1315 = vset.pattern.permute.xlu0 1
        %1316 = vperm.xlu0 %1315, %v1261
        %v1317 = vpop.permute.xlu0 %1316
        %v1319 = vlaneseq
        %v1320 = vshrl.u32 %v1319, 7
        %v1321 = vsub.s32 1, %v1320
        %v1322 = vrot.slane %v1258, %v1321
        %v1323 = vlaneseq
        %v1324 = vshrl.u32 %v1323, 7
        %v1325 = vsub.s32 5, %v1324
        %v1326 = vrot.slane %v1258, %v1325
        %v1327 = vlaneseq
        %v1328 = vshrl.u32 %v1327, 7
        %v1329 = vsub.s32 1, %v1328
        %v1330 = vrot.slane %v1259, %v1329
        %v1334 = vlaneseq
        %v1335 = vshrl.u32 %v1334, 7
        %v1336 = vsub.s32 1, %v1335
        %v1337 = vrot.slane %v1322, %v1336
        %v1338 = vlaneseq
        %v1339 = vshrl.u32 %v1338, 7
        %v1340 = vsub.s32 1, %v1339
        %v1341 = vrot.slane %v1326, %v1340
        %v1342 = vlaneseq
        %v1343 = vshrl.u32 %v1342, 7
        %v1344 = vsub.s32 1, %v1343
        %v1345 = vrot.slane %v1330, %v1344
        %v1346 = vmul.f32 %v1317, %v1337
        %v1347 = vmul.f32 %v1317, %v1341
        %v1348 = vmul.f32 %v1317, %v1345
        %1352 = vrot.lane.b32.xlu0 %v1346, 110
        %v1353 = vpop.permute.xlu0 %1352
        %1354 = vrot.lane.b32.xlu0 %v1347, 110
        %v1355 = vpop.permute.xlu0 %1354
        %1356 = vrot.lane.b32.xlu0 %v1348, 110
        %v1357 = vpop.permute.xlu0 %1356
        %v1358 = vsel %vm1308, %v1353, %v1355
        %v1359 = vsel %vm1308, %v1355, %v1357
        %v1362 = vadd.f32 %v1313, %v1358
        %v1363 = vadd.f32 %v1314, %v1359
        %1364 = vset.pattern.permute.xlu0 2
        %1365 = vperm.xlu0 %1364, %v1261
        %v1366 = vpop.permute.xlu0 %1365
        %v1368 = vlaneseq
        %v1369 = vshrl.u32 %v1368, 7
        %v1370 = vsub.s32 2, %v1369
        %v1371 = vrot.slane %v1258, %v1370
        %v1372 = vlaneseq
        %v1373 = vshrl.u32 %v1372, 7
        %v1374 = vsub.s32 6, %v1373
        %v1375 = vrot.slane %v1258, %v1374
        %v1376 = vlaneseq
        %v1377 = vshrl.u32 %v1376, 7
        %v1378 = vsub.s32 2, %v1377
        %v1379 = vrot.slane %v1259, %v1378
        %v1383 = vlaneseq
        %v1384 = vshrl.u32 %v1383, 7
        %v1385 = vsub.s32 2, %v1384
        %v1386 = vrot.slane %v1371, %v1385
        %v1387 = vlaneseq
        %v1388 = vshrl.u32 %v1387, 7
        %v1389 = vsub.s32 2, %v1388
        %v1390 = vrot.slane %v1375, %v1389
        %v1391 = vlaneseq
        %v1392 = vshrl.u32 %v1391, 7
        %v1393 = vsub.s32 2, %v1392
        %v1394 = vrot.slane %v1379, %v1393
        %v1395 = vmul.f32 %v1366, %v1386
        %v1396 = vmul.f32 %v1366, %v1390
        %v1397 = vmul.f32 %v1366, %v1394
        %1401 = vrot.lane.b32.xlu0 %v1395, 110
        %v1402 = vpop.permute.xlu0 %1401
        %1403 = vrot.lane.b32.xlu0 %v1396, 110
        %v1404 = vpop.permute.xlu0 %1403
        %1405 = vrot.lane.b32.xlu0 %v1397, 110
        %v1406 = vpop.permute.xlu0 %1405
        %v1407 = vsel %vm1308, %v1402, %v1404
        %v1408 = vsel %vm1308, %v1404, %v1406
        %v1411 = vadd.f32 %v1362, %v1407
        %v1412 = vadd.f32 %v1363, %v1408
        %1413 = vset.pattern.permute.xlu0 3
        %1414 = vperm.xlu0 %1413, %v1261
        %v1415 = vpop.permute.xlu0 %1414
        %v1417 = vlaneseq
        %v1418 = vshrl.u32 %v1417, 7
        %v1419 = vsub.s32 3, %v1418
        %v1420 = vrot.slane %v1258, %v1419
        %v1421 = vlaneseq
        %v1422 = vshrl.u32 %v1421, 7
        %v1423 = vsub.s32 7, %v1422
        %v1424 = vrot.slane %v1258, %v1423
        %v1425 = vlaneseq
        %v1426 = vshrl.u32 %v1425, 7
        %v1427 = vsub.s32 3, %v1426
        %v1428 = vrot.slane %v1259, %v1427
        %v1432 = vlaneseq
        %v1433 = vshrl.u32 %v1432, 7
        %v1434 = vsub.s32 3, %v1433
        %v1435 = vrot.slane %v1420, %v1434
        %v1436 = vlaneseq
        %v1437 = vshrl.u32 %v1436, 7
        %v1438 = vsub.s32 3, %v1437
        %v1439 = vrot.slane %v1424, %v1438
        %v1440 = vlaneseq
        %v1441 = vshrl.u32 %v1440, 7
        %v1442 = vsub.s32 3, %v1441
        %v1443 = vrot.slane %v1428, %v1442
        %v1444 = vmul.f32 %v1415, %v1435
        %v1445 = vmul.f32 %v1415, %v1439
        %v1446 = vmul.f32 %v1415, %v1443
        %1450 = vrot.lane.b32.xlu0 %v1444, 110
        %v1451 = vpop.permute.xlu0 %1450
        %1452 = vrot.lane.b32.xlu0 %v1445, 110
        %v1453 = vpop.permute.xlu0 %1452
        %1454 = vrot.lane.b32.xlu0 %v1446, 110
        %v1455 = vpop.permute.xlu0 %1454
        %v1456 = vsel %vm1308, %v1451, %v1453
        %v1457 = vsel %vm1308, %v1453, %v1455
        %v1460 = vadd.f32 %v1411, %v1456
        %v1461 = vadd.f32 %v1412, %v1457
        %v1462 = vld [vmem:[#allocation2] sm:$0xff]
        %v1463 = vld [vmem:[#allocation2 + $0x8] sm:$0xf]
        %s1464 = scalar_lea.vmem %s2, 6
        %v1465 = vld [vmem:[%s1464] ss:$8 sm:$0x3]
        %v1467 = vlaneseq
        %v1468 = vshrl.u32 %v1467, 7
        %v1469 = vsub.s32 0, %v1468
        %v1470 = vrot.slane %v1465, %v1469
        %v1471 = vlaneseq
        %v1472 = vshrl.u32 %v1471, 7
        %v1473 = vsub.s32 1, %v1472
        %v1474 = vrot.slane %v1465, %v1473
        %v1475 = vcombine.low %v1470, %v1474
        %1476 = vrot.lane.b32.xlu0 %v1475, 32
        %v1477 = vpop.permute.xlu0 %1476
        %v1478 = vrot.slane %v1477, 4
        %vm1479 = vcmask 261120
        %v1480 = vsel %vm1479, %v1478, %v1477
        %v1483 = vmul.f32 %v1462, %v1480
        %v1484 = vmul.f32 %v1463, %v1478
        %s1485 = scalar_lea.vmem %s234, 24
        %v1486 = vld [vmem:[%s1485] sm:$0xf]
        %1488 = vset.pattern.permute.xlu0 0
        %1489 = vperm.xlu0 %1488, %v1486
        %v1490 = vpop.permute.xlu0 %1489
        %v1494 = vlaneseq
        %v1495 = vshrl.u32 %v1494, 7
        %v1496 = vsub.s32 0, %v1495
        %v1497 = vrot.slane %v1483, %v1496
        %v1498 = vlaneseq
        %v1499 = vshrl.u32 %v1498, 7
        %v1500 = vsub.s32 4, %v1499
        %v1501 = vrot.slane %v1483, %v1500
        %v1502 = vlaneseq
        %v1503 = vshrl.u32 %v1502, 7
        %v1504 = vsub.s32 0, %v1503
        %v1505 = vrot.slane %v1484, %v1504
        %v1509 = vlaneseq
        %v1510 = vshrl.u32 %v1509, 7
        %v1511 = vsub.s32 0, %v1510
        %v1512 = vrot.slane %v1497, %v1511
        %v1513 = vlaneseq
        %v1514 = vshrl.u32 %v1513, 7
        %v1515 = vsub.s32 0, %v1514
        %v1516 = vrot.slane %v1501, %v1515
        %v1517 = vlaneseq
        %v1518 = vshrl.u32 %v1517, 7
        %v1519 = vsub.s32 0, %v1518
        %v1520 = vrot.slane %v1505, %v1519
        %v1521 = vmul.f32 %v1490, %v1512
        %v1522 = vmul.f32 %v1490, %v1516
        %v1523 = vmul.f32 %v1490, %v1520
        %1527 = vrot.lane.b32.xlu0 %v1521, 96
        %v1528 = vpop.permute.xlu0 %1527
        %1529 = vrot.lane.b32.xlu0 %v1522, 96
        %v1530 = vpop.permute.xlu0 %1529
        %1531 = vrot.lane.b32.xlu0 %v1523, 96
        %v1532 = vpop.permute.xlu0 %1531
        %vm1533 = vcmask 785408
        %v1534 = vsel %vm1533, %v1528, %v1530
        %v1535 = vsel %vm1533, %v1530, %v1532
        %v1538 = vadd.f32 %v1460, %v1534
        %v1539 = vadd.f32 %v1461, %v1535
        %1540 = vset.pattern.permute.xlu0 1
        %1541 = vperm.xlu0 %1540, %v1486
        %v1542 = vpop.permute.xlu0 %1541
        %v1544 = vlaneseq
        %v1545 = vshrl.u32 %v1544, 7
        %v1546 = vsub.s32 1, %v1545
        %v1547 = vrot.slane %v1483, %v1546
        %v1548 = vlaneseq
        %v1549 = vshrl.u32 %v1548, 7
        %v1550 = vsub.s32 5, %v1549
        %v1551 = vrot.slane %v1483, %v1550
        %v1552 = vlaneseq
        %v1553 = vshrl.u32 %v1552, 7
        %v1554 = vsub.s32 1, %v1553
        %v1555 = vrot.slane %v1484, %v1554
        %v1559 = vlaneseq
        %v1560 = vshrl.u32 %v1559, 7
        %v1561 = vsub.s32 1, %v1560
        %v1562 = vrot.slane %v1547, %v1561
        %v1563 = vlaneseq
        %v1564 = vshrl.u32 %v1563, 7
        %v1565 = vsub.s32 1, %v1564
        %v1566 = vrot.slane %v1551, %v1565
        %v1567 = vlaneseq
        %v1568 = vshrl.u32 %v1567, 7
        %v1569 = vsub.s32 1, %v1568
        %v1570 = vrot.slane %v1555, %v1569
        %v1571 = vmul.f32 %v1542, %v1562
        %v1572 = vmul.f32 %v1542, %v1566
        %v1573 = vmul.f32 %v1542, %v1570
        %1577 = vrot.lane.b32.xlu0 %v1571, 96
        %v1578 = vpop.permute.xlu0 %1577
        %1579 = vrot.lane.b32.xlu0 %v1572, 96
        %v1580 = vpop.permute.xlu0 %1579
        %1581 = vrot.lane.b32.xlu0 %v1573, 96
        %v1582 = vpop.permute.xlu0 %1581
        %v1583 = vsel %vm1533, %v1578, %v1580
        %v1584 = vsel %vm1533, %v1580, %v1582
        %v1587 = vadd.f32 %v1538, %v1583
        %v1588 = vadd.f32 %v1539, %v1584
        %1589 = vset.pattern.permute.xlu0 2
        %1590 = vperm.xlu0 %1589, %v1486
        %v1591 = vpop.permute.xlu0 %1590
        %v1593 = vlaneseq
        %v1594 = vshrl.u32 %v1593, 7
        %v1595 = vsub.s32 2, %v1594
        %v1596 = vrot.slane %v1483, %v1595
        %v1597 = vlaneseq
        %v1598 = vshrl.u32 %v1597, 7
        %v1599 = vsub.s32 6, %v1598
        %v1600 = vrot.slane %v1483, %v1599
        %v1601 = vlaneseq
        %v1602 = vshrl.u32 %v1601, 7
        %v1603 = vsub.s32 2, %v1602
        %v1604 = vrot.slane %v1484, %v1603
        %v1608 = vlaneseq
        %v1609 = vshrl.u32 %v1608, 7
        %v1610 = vsub.s32 2, %v1609
        %v1611 = vrot.slane %v1596, %v1610
        %v1612 = vlaneseq
        %v1613 = vshrl.u32 %v1612, 7
        %v1614 = vsub.s32 2, %v1613
        %v1615 = vrot.slane %v1600, %v1614
        %v1616 = vlaneseq
        %v1617 = vshrl.u32 %v1616, 7
        %v1618 = vsub.s32 2, %v1617
        %v1619 = vrot.slane %v1604, %v1618
        %v1620 = vmul.f32 %v1591, %v1611
        %v1621 = vmul.f32 %v1591, %v1615
        %v1622 = vmul.f32 %v1591, %v1619
        %1626 = vrot.lane.b32.xlu0 %v1620, 96
        %v1627 = vpop.permute.xlu0 %1626
        %1628 = vrot.lane.b32.xlu0 %v1621, 96
        %v1629 = vpop.permute.xlu0 %1628
        %1630 = vrot.lane.b32.xlu0 %v1622, 96
        %v1631 = vpop.permute.xlu0 %1630
        %v1632 = vsel %vm1533, %v1627, %v1629
        %v1633 = vsel %vm1533, %v1629, %v1631
        %v1636 = vadd.f32 %v1587, %v1632
        %v1637 = vadd.f32 %v1588, %v1633
        %1638 = vset.pattern.permute.xlu0 3
        %1639 = vperm.xlu0 %1638, %v1486
        %v1640 = vpop.permute.xlu0 %1639
        %v1642 = vlaneseq
        %v1643 = vshrl.u32 %v1642, 7
        %v1644 = vsub.s32 3, %v1643
        %v1645 = vrot.slane %v1483, %v1644
        %v1646 = vlaneseq
        %v1647 = vshrl.u32 %v1646, 7
        %v1648 = vsub.s32 7, %v1647
        %v1649 = vrot.slane %v1483, %v1648
        %v1650 = vlaneseq
        %v1651 = vshrl.u32 %v1650, 7
        %v1652 = vsub.s32 3, %v1651
        %v1653 = vrot.slane %v1484, %v1652
        %v1657 = vlaneseq
        %v1658 = vshrl.u32 %v1657, 7
        %v1659 = vsub.s32 3, %v1658
        %v1660 = vrot.slane %v1645, %v1659
        %v1661 = vlaneseq
        %v1662 = vshrl.u32 %v1661, 7
        %v1663 = vsub.s32 3, %v1662
        %v1664 = vrot.slane %v1649, %v1663
        %v1665 = vlaneseq
        %v1666 = vshrl.u32 %v1665, 7
        %v1667 = vsub.s32 3, %v1666
        %v1668 = vrot.slane %v1653, %v1667
        %v1669 = vmul.f32 %v1640, %v1660
        %v1670 = vmul.f32 %v1640, %v1664
        %v1671 = vmul.f32 %v1640, %v1668
        %1675 = vrot.lane.b32.xlu0 %v1669, 96
        %v1676 = vpop.permute.xlu0 %1675
        %1677 = vrot.lane.b32.xlu0 %v1670, 96
        %v1678 = vpop.permute.xlu0 %1677
        %1679 = vrot.lane.b32.xlu0 %v1671, 96
        %v1680 = vpop.permute.xlu0 %1679
        %v1681 = vsel %vm1533, %v1676, %v1678
        %v1682 = vsel %vm1533, %v1678, %v1680
        %v1685 = vadd.f32 %v1636, %v1681
        %v1686 = vadd.f32 %v1637, %v1682
        %v1687 = vld [vmem:[#allocation2] sm:$0xff]
        %v1688 = vld [vmem:[#allocation2 + $0x8] sm:$0xf]
        %s1689 = scalar_lea.vmem %s234, 28
        %v1690 = vld [vmem:[%s1689] sm:$0xf]
        %1692 = vset.pattern.permute.xlu0 0
        %1693 = vperm.xlu0 %1692, %v1690
        %v1694 = vpop.permute.xlu0 %1693
        %v1698 = vlaneseq
        %v1699 = vshrl.u32 %v1698, 7
        %v1700 = vsub.s32 0, %v1699
        %v1701 = vrot.slane %v1687, %v1700
        %v1702 = vlaneseq
        %v1703 = vshrl.u32 %v1702, 7
        %v1704 = vsub.s32 4, %v1703
        %v1705 = vrot.slane %v1687, %v1704
        %v1706 = vlaneseq
        %v1707 = vshrl.u32 %v1706, 7
        %v1708 = vsub.s32 0, %v1707
        %v1709 = vrot.slane %v1688, %v1708
        %v1713 = vlaneseq
        %v1714 = vshrl.u32 %v1713, 7
        %v1715 = vsub.s32 0, %v1714
        %v1716 = vrot.slane %v1701, %v1715
        %v1717 = vlaneseq
        %v1718 = vshrl.u32 %v1717, 7
        %v1719 = vsub.s32 0, %v1718
        %v1720 = vrot.slane %v1705, %v1719
        %v1721 = vlaneseq
        %v1722 = vshrl.u32 %v1721, 7
        %v1723 = vsub.s32 0, %v1722
        %v1724 = vrot.slane %v1709, %v1723
        %v1725 = vmul.f32 %v1694, %v1716
        %v1726 = vmul.f32 %v1694, %v1720
        %v1727 = vmul.f32 %v1694, %v1724
        %1731 = vrot.lane.b32.xlu0 %v1725, 95
        %v1732 = vpop.permute.xlu0 %1731
        %1733 = vrot.lane.b32.xlu0 %v1726, 95
        %v1734 = vpop.permute.xlu0 %1733
        %1735 = vrot.lane.b32.xlu0 %v1727, 95
        %v1736 = vpop.permute.xlu0 %1735
        %vm1737 = vcmask 777216
        %v1738 = vsel %vm1737, %v1732, %v1734
        %v1739 = vsel %vm1737, %v1734, %v1736
        %v1742 = vadd.f32 %v1685, %v1738
        %v1743 = vadd.f32 %v1686, %v1739
        %1744 = vset.pattern.permute.xlu0 1
        %1745 = vperm.xlu0 %1744, %v1690
        %v1746 = vpop.permute.xlu0 %1745
        %v1748 = vlaneseq
        %v1749 = vshrl.u32 %v1748, 7
        %v1750 = vsub.s32 1, %v1749
        %v1751 = vrot.slane %v1687, %v1750
        %v1752 = vlaneseq
        %v1753 = vshrl.u32 %v1752, 7
        %v1754 = vsub.s32 5, %v1753
        %v1755 = vrot.slane %v1687, %v1754
        %v1756 = vlaneseq
        %v1757 = vshrl.u32 %v1756, 7
        %v1758 = vsub.s32 1, %v1757
        %v1759 = vrot.slane %v1688, %v1758
        %v1763 = vlaneseq
        %v1764 = vshrl.u32 %v1763, 7
        %v1765 = vsub.s32 1, %v1764
        %v1766 = vrot.slane %v1751, %v1765
        %v1767 = vlaneseq
        %v1768 = vshrl.u32 %v1767, 7
        %v1769 = vsub.s32 1, %v1768
        %v1770 = vrot.slane %v1755, %v1769
        %v1771 = vlaneseq
        %v1772 = vshrl.u32 %v1771, 7
        %v1773 = vsub.s32 1, %v1772
        %v1774 = vrot.slane %v1759, %v1773
        %v1775 = vmul.f32 %v1746, %v1766
        %v1776 = vmul.f32 %v1746, %v1770
        %v1777 = vmul.f32 %v1746, %v1774
        %1781 = vrot.lane.b32.xlu0 %v1775, 95
        %v1782 = vpop.permute.xlu0 %1781
        %1783 = vrot.lane.b32.xlu0 %v1776, 95
        %v1784 = vpop.permute.xlu0 %1783
        %1785 = vrot.lane.b32.xlu0 %v1777, 95
        %v1786 = vpop.permute.xlu0 %1785
        %v1787 = vsel %vm1737, %v1782, %v1784
        %v1788 = vsel %vm1737, %v1784, %v1786
        %v1791 = vadd.f32 %v1742, %v1787
        %v1792 = vadd.f32 %v1743, %v1788
        %1793 = vset.pattern.permute.xlu0 2
        %1794 = vperm.xlu0 %1793, %v1690
        %v1795 = vpop.permute.xlu0 %1794
        %v1797 = vlaneseq
        %v1798 = vshrl.u32 %v1797, 7
        %v1799 = vsub.s32 2, %v1798
        %v1800 = vrot.slane %v1687, %v1799
        %v1801 = vlaneseq
        %v1802 = vshrl.u32 %v1801, 7
        %v1803 = vsub.s32 6, %v1802
        %v1804 = vrot.slane %v1687, %v1803
        %v1805 = vlaneseq
        %v1806 = vshrl.u32 %v1805, 7
        %v1807 = vsub.s32 2, %v1806
        %v1808 = vrot.slane %v1688, %v1807
        %v1812 = vlaneseq
        %v1813 = vshrl.u32 %v1812, 7
        %v1814 = vsub.s32 2, %v1813
        %v1815 = vrot.slane %v1800, %v1814
        %v1816 = vlaneseq
        %v1817 = vshrl.u32 %v1816, 7
        %v1818 = vsub.s32 2, %v1817
        %v1819 = vrot.slane %v1804, %v1818
        %v1820 = vlaneseq
        %v1821 = vshrl.u32 %v1820, 7
        %v1822 = vsub.s32 2, %v1821
        %v1823 = vrot.slane %v1808, %v1822
        %v1824 = vmul.f32 %v1795, %v1815
        %v1825 = vmul.f32 %v1795, %v1819
        %v1826 = vmul.f32 %v1795, %v1823
        %1830 = vrot.lane.b32.xlu0 %v1824, 95
        %v1831 = vpop.permute.xlu0 %1830
        %1832 = vrot.lane.b32.xlu0 %v1825, 95
        %v1833 = vpop.permute.xlu0 %1832
        %1834 = vrot.lane.b32.xlu0 %v1826, 95
        %v1835 = vpop.permute.xlu0 %1834
        %v1836 = vsel %vm1737, %v1831, %v1833
        %v1837 = vsel %vm1737, %v1833, %v1835
        %v1840 = vadd.f32 %v1791, %v1836
        %v1841 = vadd.f32 %v1792, %v1837
        %1842 = vset.pattern.permute.xlu0 3
        %1843 = vperm.xlu0 %1842, %v1690
        %v1844 = vpop.permute.xlu0 %1843
        %v1846 = vlaneseq
        %v1847 = vshrl.u32 %v1846, 7
        %v1848 = vsub.s32 3, %v1847
        %v1849 = vrot.slane %v1687, %v1848
        %v1850 = vlaneseq
        %v1851 = vshrl.u32 %v1850, 7
        %v1852 = vsub.s32 7, %v1851
        %v1853 = vrot.slane %v1687, %v1852
        %v1854 = vlaneseq
        %v1855 = vshrl.u32 %v1854, 7
        %v1856 = vsub.s32 3, %v1855
        %v1857 = vrot.slane %v1688, %v1856
        %v1861 = vlaneseq
        %v1862 = vshrl.u32 %v1861, 7
        %v1863 = vsub.s32 3, %v1862
        %v1864 = vrot.slane %v1849, %v1863
        %v1865 = vlaneseq
        %v1866 = vshrl.u32 %v1865, 7
        %v1867 = vsub.s32 3, %v1866
        %v1868 = vrot.slane %v1853, %v1867
        %v1869 = vlaneseq
        %v1870 = vshrl.u32 %v1869, 7
        %v1871 = vsub.s32 3, %v1870
        %v1872 = vrot.slane %v1857, %v1871
        %v1873 = vmul.f32 %v1844, %v1864
        %v1874 = vmul.f32 %v1844, %v1868
        %v1875 = vmul.f32 %v1844, %v1872
        %1879 = vrot.lane.b32.xlu0 %v1873, 95
        %v1880 = vpop.permute.xlu0 %1879
        %1881 = vrot.lane.b32.xlu0 %v1874, 95
        %v1882 = vpop.permute.xlu0 %1881
        %1883 = vrot.lane.b32.xlu0 %v1875, 95
        %v1884 = vpop.permute.xlu0 %1883
        %v1885 = vsel %vm1737, %v1880, %v1882
        %v1886 = vsel %vm1737, %v1882, %v1884
        %v1889 = vadd.f32 %v1840, %v1885
        %v1890 = vadd.f32 %v1841, %v1886
        %s1891 = scalar_lea.vmem %s2, 16
        %v1892 = vld [vmem:[%s1891] ss:$8 sm:$0x3]
        %v1894 = vlaneseq
        %v1895 = vshrl.u32 %v1894, 7
        %v1896 = vsub.s32 0, %v1895
        %v1897 = vrot.slane %v1892, %v1896
        %v1898 = vlaneseq
        %v1899 = vshrl.u32 %v1898, 7
        %v1900 = vsub.s32 1, %v1899
        %v1901 = vrot.slane %v1892, %v1900
        %v1902 = vcombine.low %v1897, %v1901
        %1903 = vrot.lane.b32.xlu0 %v1902, 34
        %v1904 = vpop.permute.xlu0 %1903
        %v1905 = vrot.slane %v1904, 4
        %vm1906 = vcmask 277504
        %v1907 = vsel %vm1906, %v1905, %v1904
        %v1910 = vmul.f32 %v1687, %v1907
        %v1911 = vmul.f32 %v1688, %v1905
        %s1912 = scalar_lea.vmem %s234, 32
        %v1913 = vld [vmem:[%s1912] sm:$0xf]
        %1915 = vset.pattern.permute.xlu0 0
        %1916 = vperm.xlu0 %1915, %v1913
        %v1917 = vpop.permute.xlu0 %1916
        %v1921 = vlaneseq
        %v1922 = vshrl.u32 %v1921, 7
        %v1923 = vsub.s32 0, %v1922
        %v1924 = vrot.slane %v1910, %v1923
        %v1925 = vlaneseq
        %v1926 = vshrl.u32 %v1925, 7
        %v1927 = vsub.s32 4, %v1926
        %v1928 = vrot.slane %v1910, %v1927
        %v1929 = vlaneseq
        %v1930 = vshrl.u32 %v1929, 7
        %v1931 = vsub.s32 0, %v1930
        %v1932 = vrot.slane %v1911, %v1931
        %v1936 = vlaneseq
        %v1937 = vshrl.u32 %v1936, 7
        %v1938 = vsub.s32 0, %v1937
        %v1939 = vrot.slane %v1924, %v1938
        %v1940 = vlaneseq
        %v1941 = vshrl.u32 %v1940, 7
        %v1942 = vsub.s32 0, %v1941
        %v1943 = vrot.slane %v1928, %v1942
        %v1944 = vlaneseq
        %v1945 = vshrl.u32 %v1944, 7
        %v1946 = vsub.s32 0, %v1945
        %v1947 = vrot.slane %v1932, %v1946
        %v1948 = vmul.f32 %v1917, %v1939
        %v1949 = vmul.f32 %v1917, %v1943
        %v1950 = vmul.f32 %v1917, %v1947
        %1954 = vrot.lane.b32.xlu0 %v1948, 94
        %v1955 = vpop.permute.xlu0 %1954
        %1956 = vrot.lane.b32.xlu0 %v1949, 94
        %v1957 = vpop.permute.xlu0 %1956
        %1958 = vrot.lane.b32.xlu0 %v1950, 94
        %v1959 = vpop.permute.xlu0 %1958
        %vm1960 = vcmask 769024
        %v1961 = vsel %vm1960, %v1955, %v1957
        %v1962 = vsel %vm1960, %v1957, %v1959
        %v1965 = vadd.f32 %v1889, %v1961
        %v1966 = vadd.f32 %v1890, %v1962
        %1967 = vset.pattern.permute.xlu0 1
        %1968 = vperm.xlu0 %1967, %v1913
        %v1969 = vpop.permute.xlu0 %1968
        %v1971 = vlaneseq
        %v1972 = vshrl.u32 %v1971, 7
        %v1973 = vsub.s32 1, %v1972
        %v1974 = vrot.slane %v1910, %v1973
        %v1975 = vlaneseq
        %v1976 = vshrl.u32 %v1975, 7
        %v1977 = vsub.s32 5, %v1976
        %v1978 = vrot.slane %v1910, %v1977
        %v1979 = vlaneseq
        %v1980 = vshrl.u32 %v1979, 7
        %v1981 = vsub.s32 1, %v1980
        %v1982 = vrot.slane %v1911, %v1981
        %v1986 = vlaneseq
        %v1987 = vshrl.u32 %v1986, 7
        %v1988 = vsub.s32 1, %v1987
        %v1989 = vrot.slane %v1974, %v1988
        %v1990 = vlaneseq
        %v1991 = vshrl.u32 %v1990, 7
        %v1992 = vsub.s32 1, %v1991
        %v1993 = vrot.slane %v1978, %v1992
        %v1994 = vlaneseq
        %v1995 = vshrl.u32 %v1994, 7
        %v1996 = vsub.s32 1, %v1995
        %v1997 = vrot.slane %v1982, %v1996
        %v1998 = vmul.f32 %v1969, %v1989
        %v1999 = vmul.f32 %v1969, %v1993
        %v2000 = vmul.f32 %v1969, %v1997
        %2004 = vrot.lane.b32.xlu0 %v1998, 94
        %v2005 = vpop.permute.xlu0 %2004
        %2006 = vrot.lane.b32.xlu0 %v1999, 94
        %v2007 = vpop.permute.xlu0 %2006
        %2008 = vrot.lane.b32.xlu0 %v2000, 94
        %v2009 = vpop.permute.xlu0 %2008
        %v2010 = vsel %vm1960, %v2005, %v2007
        %v2011 = vsel %vm1960, %v2007, %v2009
        %v2014 = vadd.f32 %v1965, %v2010
        %v2015 = vadd.f32 %v1966, %v2011
        %2016 = vset.pattern.permute.xlu0 2
        %2017 = vperm.xlu0 %2016, %v1913
        %v2018 = vpop.permute.xlu0 %2017
        %v2020 = vlaneseq
        %v2021 = vshrl.u32 %v2020, 7
        %v2022 = vsub.s32 2, %v2021
        %v2023 = vrot.slane %v1910, %v2022
        %v2024 = vlaneseq
        %v2025 = vshrl.u32 %v2024, 7
        %v2026 = vsub.s32 6, %v2025
        %v2027 = vrot.slane %v1910, %v2026
        %v2028 = vlaneseq
        %v2029 = vshrl.u32 %v2028, 7
        %v2030 = vsub.s32 2, %v2029
        %v2031 = vrot.slane %v1911, %v2030
        %v2035 = vlaneseq
        %v2036 = vshrl.u32 %v2035, 7
        %v2037 = vsub.s32 2, %v2036
        %v2038 = vrot.slane %v2023, %v2037
        %v2039 = vlaneseq
        %v2040 = vshrl.u32 %v2039, 7
        %v2041 = vsub.s32 2, %v2040
        %v2042 = vrot.slane %v2027, %v2041
        %v2043 = vlaneseq
        %v2044 = vshrl.u32 %v2043, 7
        %v2045 = vsub.s32 2, %v2044
        %v2046 = vrot.slane %v2031, %v2045
        %v2047 = vmul.f32 %v2018, %v2038
        %v2048 = vmul.f32 %v2018, %v2042
        %v2049 = vmul.f32 %v2018, %v2046
        %2053 = vrot.lane.b32.xlu0 %v2047, 94
        %v2054 = vpop.permute.xlu0 %2053
        %2055 = vrot.lane.b32.xlu0 %v2048, 94
        %v2056 = vpop.permute.xlu0 %2055
        %2057 = vrot.lane.b32.xlu0 %v2049, 94
        %v2058 = vpop.permute.xlu0 %2057
        %v2059 = vsel %vm1960, %v2054, %v2056
        %v2060 = vsel %vm1960, %v2056, %v2058
        %v2063 = vadd.f32 %v2014, %v2059
        %v2064 = vadd.f32 %v2015, %v2060
        %2065 = vset.pattern.permute.xlu0 3
        %2066 = vperm.xlu0 %2065, %v1913
        %v2067 = vpop.permute.xlu0 %2066
        %v2069 = vlaneseq
        %v2070 = vshrl.u32 %v2069, 7
        %v2071 = vsub.s32 3, %v2070
        %v2072 = vrot.slane %v1910, %v2071
        %v2073 = vlaneseq
        %v2074 = vshrl.u32 %v2073, 7
        %v2075 = vsub.s32 7, %v2074
        %v2076 = vrot.slane %v1910, %v2075
        %v2077 = vlaneseq
        %v2078 = vshrl.u32 %v2077, 7
        %v2079 = vsub.s32 3, %v2078
        %v2080 = vrot.slane %v1911, %v2079
        %v2084 = vlaneseq
        %v2085 = vshrl.u32 %v2084, 7
        %v2086 = vsub.s32 3, %v2085
        %v2087 = vrot.slane %v2072, %v2086
        %v2088 = vlaneseq
        %v2089 = vshrl.u32 %v2088, 7
        %v2090 = vsub.s32 3, %v2089
        %v2091 = vrot.slane %v2076, %v2090
        %v2092 = vlaneseq
        %v2093 = vshrl.u32 %v2092, 7
        %v2094 = vsub.s32 3, %v2093
        %v2095 = vrot.slane %v2080, %v2094
        %v2096 = vmul.f32 %v2067, %v2087
        %v2097 = vmul.f32 %v2067, %v2091
        %v2098 = vmul.f32 %v2067, %v2095
        %2102 = vrot.lane.b32.xlu0 %v2096, 94
        %v2103 = vpop.permute.xlu0 %2102
        %2104 = vrot.lane.b32.xlu0 %v2097, 94
        %v2105 = vpop.permute.xlu0 %2104
        %2106 = vrot.lane.b32.xlu0 %v2098, 94
        %v2107 = vpop.permute.xlu0 %2106
        %v2108 = vsel %vm1960, %v2103, %v2105
        %v2109 = vsel %vm1960, %v2105, %v2107
        %v2112 = vadd.f32 %v2063, %v2108
        %v2113 = vadd.f32 %v2064, %v2109
        %v2114 = vld [vmem:[%s238] sm:$0xf]
        %2116 = vset.pattern.permute.xlu0 0
        %2117 = vperm.xlu0 %2116, %v2114
        %v2118 = vpop.permute.xlu0 %2117
        %v2120 = vadd.f32 %v2112, %v2118
        %v2121 = vadd.f32 %v2113, %v2118
        %v2122 = vmax.f32 %v2120, 0.0
        %v2123 = vmax.f32 %v2121, 0.0
        %v2126 = vcombine.low %v2122, %v2123
        %2128 = vst [vmem:[%s230] sm:$0xff] %v2126
        %s2129 = sand.u32 %s139, 1
        %s2130 = scalar_lea.sflag [#allocation4], %s2129
        %s2131 = sand.u32 %s139, 1
        %s2132 = smul.addr %s2131, 8
        %s2133 = scalar_lea.vmem [#allocation3], %s2132
        // Predicated region
        $region37: #{tpu_custom_call.1} parent=35 // pred_check
          %p2134 = pneg %p149
        $region38: #{tpu_custom_call.1} parent=35 // pred_check_branch
          %2136 = sbr.rel (%p2134) target = $region40
        $region39: #{tpu_custom_call.1} parent=35 // pred_region
          %s2138 = ssub.s32 128, 128
          %2139 = vsyncadd %s2130, %s2138
          %s2140 = smul.addr %s23, 2
          %s2141 = smul.addr %s22, 2
          %s2142 = sadd.s32 %s2140, %s2141
          %s2143 = smul.addr %s2142, 64
          %s2144 = scalar_lea.hbm %s4, %s2143
          %s2146 = sshll.u32 %s2133, 4
          %s2147 = int_to_ptr.vmem [resolvable:$true] %s2146
          %2149 = dma.vmem_to_hbm [thread:$0]  %s2147, 128, %s2144, %s2130
        $region40: #{tpu_custom_call.1} parent=35 // pred_fallthru
          _
      $region36: #{tpu_custom_call.1} parent=5 // pred_fallthru
        _
      %p2150 = scmp.le.s32.totalorder 2, %s13
      // Predicated region
      $region41: #{tpu_custom_call.1} parent=5 // pred_check
        %p2151 = pneg %p2150
      $region42: #{tpu_custom_call.1} parent=5 // pred_check_branch
        %2153 = sbr.rel (%p2151) target = $region44
      $region43: #{tpu_custom_call.1} parent=5 // pred_region
        %s2154 = ssub.s32 %s13, 2
        // Predicated region
        $region45: #{tpu_custom_call.1} parent=43 // pred_check
          %p2155 = pneg %p155
        $region46: #{tpu_custom_call.1} parent=43 // pred_check_branch
          %2157 = sbr.rel (%p2155) target = $region48
        $region47: #{tpu_custom_call.1} parent=43 // pred_region
          %s2158 = sand.u32 %s140, 1
          %s2159 = scalar_lea.sflag [#allocation4], %s2158
          %s2160 = sand.u32 %s140, 1
          %s2161 = smul.addr %s2160, 8
          %s2162 = scalar_lea.vmem [#allocation3], %s2161
          %2163 = dma.done %s2159, 128
        $region48: #{tpu_custom_call.1} parent=43 // pred_fallthru
          _
      $region44: #{tpu_custom_call.1} parent=5 // pred_fallthru
        _
    $region6: #{tpu_custom_call.1} parent=1 // loop_footer
      %s17 = sadd.s32 1, %s13
    $region7: #{tpu_custom_call.1} parent=1 // loop_footer_branch
      %12 = sbr.rel target = $region3
    $region8: #{tpu_custom_call.1} parent=1 // loop_exit
      _
    %2164 = vsyncpa [#allocation4], 1
    %s2165 = scalar_lea.sflag [#allocation4], 1
    %2166 = vsyncpa %s2165, 1

</llo_original>
